<compile_context>
chip_gen: v6e
topology: v6e:2x2x1
jax: 0.10.0
libtpu: 0.0.40
codegen_flags: <defaults>
</compile_context>

<pallas_src>
import jax
import jax.numpy as jnp
from jax.experimental import pallas as pl
from jax.experimental.pallas import tpu as pltpu

# Module constants — shrunk from the original (192 / 55 / 100) to small,
# TPU-friendly sizes while keeping the same structural relationships:
#   T = sample_width * 2,  C = n_chrom + 2.
head_size = 32
sample_width = 8
input_size1 = sample_width * 2      # T = 16 (sequence length)
n_chrom = 30
n_embd = n_chrom + 2                # C = 32 (embedding dim)
t_dropout = 0.15                    # dropout is identity in eval mode

LANE = 128                          # TPU lane width
MAX_ATTN_ROWS = 256                 # cap block_b*T (score cost is quadratic)


def pack_qkv_weights(wq, wk, wv, head_size):
    """Fold the attention scale into wq and pack [q|k|v] so each segment is
    lane-padded to its own multiple-of-128 tile.  Returns (C, 3*seg) bf16."""
    C, H = wq.shape
    seg = ((H + LANE - 1) // LANE) * LANE
    scale = jnp.float32(head_size) ** jnp.float32(-0.5)

    def pad(w):
        return jnp.pad(w, ((0, 0), (0, seg - H)))

    w = jnp.concatenate([pad(wq * scale), pad(wk), pad(wv)], axis=1)
    return w.astype(jnp.bfloat16)


def build_mask_bias(block_b, T):
    """Additive bias for the flattened (block_b*T, block_b*T) score matrix:
    0 where attention is allowed (other half of the sequence, same batch),
    -1e30 on the comm-masked entries and on all cross-batch entries."""
    comm = jnp.ones((T, T), dtype=jnp.float32)
    comm = comm.at[: T // 2, : T // 2].set(0.0)
    comm = comm.at[T // 2:, T // 2:].set(0.0)
    allowed = jnp.kron(jnp.eye(block_b, dtype=jnp.float32), comm)
    return jnp.where(allowed == 0, jnp.float32(-1e30), jnp.float32(0.0))


def head_kernel(x_ref, w_ref, bias_ref, o_ref):
    """One grid step processes a block of Bt batch elements.

    x_ref:    (Bt, T, C)            bf16
    w_ref:    (C, 3*seg)            bf16  fused [q|k|v], each segment 128-lane tile
    bias_ref: (Bt*T, Bt*T)          f32   additive mask (comm + cross-batch)
    o_ref:    (Bt, T, seg)          bf16  lane-dense output (cols >= H are zero)
    """
    Bt, T, C = x_ref.shape
    seg = w_ref.shape[1] // 3
    M = Bt * T

    # Single fused projection matmul for the whole batch block.
    x2d = x_ref[...].reshape(M, C)                                       # (M, C) bf16
    qkv = jnp.dot(x2d, w_ref[...], preferred_element_type=jnp.float32)   # (M, 3*seg) f32

    # Tile-aligned slices (lane offsets 0 / seg / 2*seg, seg a multiple of 128).
    q = qkv[:, 0 * seg:1 * seg].astype(jnp.bfloat16)
    k = qkv[:, 1 * seg:2 * seg].astype(jnp.bfloat16)
    v = qkv[:, 2 * seg:3 * seg].astype(jnp.bfloat16)

    # Block-diagonal attention for the whole batch block: one MXU pass per stage.
    # Scale already folded into the q weights; zero-padded lanes contribute 0.
    s = jax.lax.dot_general(q, k, (((1,), (1,)), ((), ())),
                            preferred_element_type=jnp.float32)          # (M, M)
    s = s + bias_ref[...]

    # Softmax over keys in f32; EUP reciprocal instead of a VPU divide.
    m = jnp.max(s, axis=-1, keepdims=True)
    e = jnp.exp(s - m)
    p = e * pl.reciprocal(jnp.sum(e, axis=-1, keepdims=True), approx=True)

    # TODO(synk): nn.Dropout(p=0.15) is omitted — forward implemented in eval mode.

    out = jnp.dot(p.astype(jnp.bfloat16), v,
                  preferred_element_type=jnp.float32)                    # (M, seg)
    o_ref[...] = out.reshape(Bt, T, seg).astype(o_ref.dtype)


def head_forward(x, w_packed, head_size, block_b=None):
    """x: (B, T, C) f32; w_packed: (C, 3*seg) bf16 from pack_qkv_weights.
    Returns (B, T, head_size) float32."""
    B, T, C = x.shape
    Wp = w_packed.shape[1]
    seg = Wp // 3

    if block_b is None:
        # Two grid steps: keeps both TensorCores busy on v7x (parallel axis),
        # while costing only ~0.35 us extra vs. a single step on v5e/v6e.
        block_b = -(-B // 2)
    # Cap so the flattened block-diagonal score matrix stays <= 256x256
    # (keeps vreg pressure sane; avoids needing an inner fori_loop).
    block_b = max(1, min(block_b, B, max(1, MAX_ATTN_ROWS // T)))
    Bp = -(-B // block_b) * block_b

    xb = x.astype(jnp.bfloat16)
    if Bp != B:
        xb = jnp.pad(xb, ((0, Bp - B), (0, 0), (0, 0)))

    bias = build_mask_bias(block_b, T)

    out = pl.pallas_call(
        head_kernel,
        out_shape=jax.ShapeDtypeStruct((Bp, T, seg), jnp.bfloat16),
        grid_spec=pltpu.PrefetchScalarGridSpec(
            num_scalar_prefetch=0,
            grid=(Bp // block_b,),
            in_specs=[
                pl.BlockSpec((block_b, T, C), lambda b: (b, 0, 0)),        # x batch block
                pl.BlockSpec((C, Wp), lambda b: (0, 0)),                   # fused QKV weight
                pl.BlockSpec((block_b * T, block_b * T), lambda b: (0, 0)),  # mask bias
            ],
            out_specs=pl.BlockSpec((block_b, T, seg), lambda b: (b, 0, 0)),
        ),
        compiler_params=pltpu.CompilerParams(
            dimension_semantics=("parallel",),   # batch blocks shard across TCs
        ),
    )(xb, w_packed, bias)

    # Strip batch + lane padding; return f32 like the PyTorch module.
    return out[:B, :, :head_size].astype(jnp.float32)


if __name__ == "__main__":
    key = jax.random.PRNGKey(0)
    k_x, k_k, k_q, k_v = jax.random.split(key, 4)

    B, T, C, H = 32, input_size1, n_embd, head_size   # 32, 16, 32, 32

    x = jax.random.normal(k_x, (B, T, C), dtype=jnp.float32)

    # nn.Linear(n_embd, head_size, bias=False) weights, stored pre-transposed
    # as (C, H) so the kernel computes x @ w.
    init_scale = 1.0 / jnp.sqrt(jnp.float32(C))
    wk = jax.random.normal(k_k, (C, H), dtype=jnp.float32) * init_scale
    wq = jax.random.normal(k_q, (C, H), dtype=jnp.float32) * init_scale
    wv = jax.random.normal(k_v, (C, H), dtype=jnp.float32) * init_scale

    w_packed = pack_qkv_weights(wq, wk, wv, H)        # (C, 384) bf16, scale folded in

    out = head_forward(x, w_packed, head_size=H)
    out = jax.block_until_ready(out)

    # Pure-JAX reference with the same bf16 matmul casts / packed weight
    # (exact softmax divide, f32 output).
    seg = w_packed.shape[1] // 3
    xb = x.astype(jnp.bfloat16)
    qkv_ref = jnp.einsum('btc,cf->btf', xb, w_packed,
                         preferred_element_type=jnp.float32)
    q_r = qkv_ref[..., 0 * seg:0 * seg + H].astype(jnp.bfloat16)
    k_r = qkv_ref[..., 1 * seg:1 * seg + H].astype(jnp.bfloat16)
    v_r = qkv_ref[..., 2 * seg:2 * seg + H].astype(jnp.bfloat16)
    s_r = jnp.einsum('bqd,bkd->bqk', q_r, k_r, preferred_element_type=jnp.float32)
    comm = jnp.ones((T, T), dtype=jnp.float32)
    comm = comm.at[: T // 2, : T // 2].set(0.0)
    comm = comm.at[T // 2:, T // 2:].set(0.0)
    s_r = jnp.where(comm[None] == 0, -jnp.inf, s_r)
    p_r = jax.nn.softmax(s_r, axis=-1)
    ref = jnp.einsum('bqk,bkd->bqd', p_r.astype(jnp.bfloat16), v_r,
                     preferred_element_type=jnp.float32)

    assert out.shape == (B, T, H)
    assert jnp.allclose(out, ref, atol=2e-2, rtol=2e-2), "mismatch vs JAX reference"

    print("KERNEL_OK")
</pallas_src>

<mosaic_0001>
module attributes {stable_mosaic.version = 11 : i64} {
  func.func @head_kernel(%arg0: i32, %arg1: memref<16x16x32xbf16, #tpu.memory_space<vmem>>, %arg2: memref<32x384xbf16, #tpu.memory_space<vmem>>, %arg3: memref<256x256xf32, #tpu.memory_space<vmem>>, %arg4: memref<16x16x128xbf16, #tpu.memory_space<vmem>>) attributes {dimension_semantics = [#tpu.dimension_semantics<parallel>], iteration_bounds = array<i64: 2>, scalar_prefetch = 0 : i64, scratch_operands = 0 : i64, tpu.core_type = #tpu.core_type<tc>, window_params = [{transform_indices = @transform_0, window_bounds = array<i64: 16, 16, 32>}, {pipeline_mode = #tpu.pipeline_mode<synchronous>, transform_indices = @transform_1, window_bounds = array<i64: 32, 384>}, {pipeline_mode = #tpu.pipeline_mode<synchronous>, transform_indices = @transform_2, window_bounds = array<i64: 256, 256>}, {transform_indices = @transform_3, window_bounds = array<i64: 16, 16, 128>}]} {
    %c0 = arith.constant 0 : index
    %c0_0 = arith.constant 0 : index
    %c0_1 = arith.constant 0 : index
    %0 = vector.load %arg1[%c0, %c0_0, %c0_1] : memref<16x16x32xbf16, #tpu.memory_space<vmem>>, vector<16x16x32xbf16>
    %1 = vector.shape_cast %0 : vector<16x16x32xbf16> to vector<256x32xbf16>
    %c0_2 = arith.constant 0 : index
    %c0_3 = arith.constant 0 : index
    %2 = vector.load %arg2[%c0_2, %c0_3] : memref<32x384xbf16, #tpu.memory_space<vmem>>, vector<32x384xbf16>
    %cst = arith.constant dense<0.000000e+00> : vector<256x384xf32>
    %3 = tpu.matmul %1, %2, %cst {dimension_numbers = #tpu.dot_dimension_numbers<[1], [0], [0], [1], [0, 0, 1, 1], [], []>} : vector<256x32xbf16>, vector<32x384xbf16>, vector<256x384xf32> -> vector<256x384xf32>
    %4 = vector.extract_strided_slice %3 {offsets = [0, 0], sizes = [256, 128], strides = [1, 1]} : vector<256x384xf32> to vector<256x128xf32>
    %5 = arith.truncf %4 : vector<256x128xf32> to vector<256x128xbf16>
    %6 = vector.extract_strided_slice %3 {offsets = [0, 128], sizes = [256, 128], strides = [1, 1]} : vector<256x384xf32> to vector<256x128xf32>
    %7 = arith.truncf %6 : vector<256x128xf32> to vector<256x128xbf16>
    %8 = vector.extract_strided_slice %3 {offsets = [0, 256], sizes = [256, 128], strides = [1, 1]} : vector<256x384xf32> to vector<256x128xf32>
    %9 = arith.truncf %8 : vector<256x128xf32> to vector<256x128xbf16>
    %cst_4 = arith.constant dense<0.000000e+00> : vector<256x256xf32>
    %10 = tpu.matmul %5, %7, %cst_4 {dimension_numbers = #tpu.dot_dimension_numbers<[1], [1], [0], [0], [0, 0, 1, 0], [], []>} : vector<256x128xbf16>, vector<256x128xbf16>, vector<256x256xf32> -> vector<256x256xf32>
    %c0_5 = arith.constant 0 : index
    %c0_6 = arith.constant 0 : index
    %11 = vector.load %arg3[%c0_5, %c0_6] : memref<256x256xf32, #tpu.memory_space<vmem>>, vector<256x256xf32>
    %12 = arith.addf %10, %11 : vector<256x256xf32>
    %cst_7 = arith.constant dense<0xFF800000> : vector<256xf32>
    %13 = vector.multi_reduction <maximumf>, %12, %cst_7 [1] : vector<256x256xf32> to vector<256xf32>
    %14 = vector.shape_cast %13 : vector<256xf32> to vector<256x1xf32>
    %15 = vector.broadcast %14 : vector<256x1xf32> to vector<256x256xf32>
    %16 = arith.subf %12, %15 : vector<256x256xf32>
    %17 = math.exp %16 : vector<256x256xf32>
    %cst_8 = arith.constant dense<0.000000e+00> : vector<256xf32>
    %18 = vector.multi_reduction <add>, %17, %cst_8 [1] : vector<256x256xf32> to vector<256xf32>
    %19 = vector.shape_cast %18 : vector<256xf32> to vector<256x1xf32>
    %20 = tpu.reciprocal %19 {approx = true} : vector<256x1xf32> -> vector<256x1xf32>
    %21 = vector.broadcast %20 : vector<256x1xf32> to vector<256x256xf32>
    %22 = arith.mulf %17, %21 : vector<256x256xf32>
    %23 = arith.truncf %22 : vector<256x256xf32> to vector<256x256xbf16>
    %cst_9 = arith.constant dense<0.000000e+00> : vector<256x128xf32>
    %24 = tpu.matmul %23, %9, %cst_9 {dimension_numbers = #tpu.dot_dimension_numbers<[1], [0], [0], [1], [0, 0, 1, 1], [], []>} : vector<256x256xbf16>, vector<256x128xbf16>, vector<256x128xf32> -> vector<256x128xf32>
    %25 = vector.shape_cast %24 : vector<256x128xf32> to vector<16x16x128xf32>
    %26 = arith.truncf %25 : vector<16x16x128xf32> to vector<16x16x128xbf16>
    %c0_10 = arith.constant 0 : index
    %c0_11 = arith.constant 0 : index
    %c0_12 = arith.constant 0 : index
    %27 = vector.load %arg4[%c0_10, %c0_11, %c0_12] : memref<16x16x128xbf16, #tpu.memory_space<vmem>>, vector<16x16x128xbf16>
    tpu.vector_store %arg4[%c0_10, %c0_11, %c0_12], %26 {strides = array<i32>} : memref<16x16x128xbf16, #tpu.memory_space<vmem>>, vector<16x16x128xbf16>,
    return
  }
  func.func @transform_0(%arg0: i32) -> (i32, i32, i32) {
    %c0_i32 = arith.constant 0 : i32
    %c0_i32_0 = arith.constant 0 : i32
    %c0_i32_1 = arith.constant 0 : i32
    return %arg0, %c0_i32, %c0_i32_0 : i32, i32, i32
  }
  func.func @transform_1(%arg0: i32) -> (i32, i32) {
    %c0_i32 = arith.constant 0 : i32
    %c0_i32_0 = arith.constant 0 : i32
    %c0_i32_1 = arith.constant 0 : i32
    return %c0_i32, %c0_i32_0 : i32, i32
  }
  func.func @transform_2(%arg0: i32) -> (i32, i32) {
    %c0_i32 = arith.constant 0 : i32
    %c0_i32_0 = arith.constant 0 : i32
    %c0_i32_1 = arith.constant 0 : i32
    return %c0_i32, %c0_i32_0 : i32, i32
  }
  func.func @transform_3(%arg0: i32) -> (i32, i32, i32) {
    %c0_i32 = arith.constant 0 : i32
    %c0_i32_0 = arith.constant 0 : i32
    %c0_i32_1 = arith.constant 0 : i32
    return %arg0, %c0_i32, %c0_i32_0 : i32, i32, i32
  }
}

</mosaic_0001>

<llo_original>
// kernel: tpu_custom_call.1
$region0: #{tpu_custom_call.1}
  #allocation0 [shape = 'u32[]', space=smem, size = 0x4, offset = 0x4, fixed_abs, tag = 'smem constant byte address 0x4 - core index']
  #allocation1 [shape = 'u32[144,128]{1,0:T(1,128)}', space=vmem, size = 0x12000, scoped, tag = 'internal scratch']
  %s0 = inlined_call_operand.hbm [shape: bf16[32,16,32], index: 0, kind: input, shape index: {}]
  %s1 = inlined_call_operand.hbm [shape: bf16[32,384], index: 1, kind: input, shape index: {}]
  %s2 = inlined_call_operand.hbm [shape: f32[256,256], index: 2, kind: input, shape index: {}]
  %s3 = inlined_call_operand.hbm [shape: bf16[32,16,128], index: 3, kind: output, shape index: {}]
  %s4 = sld [smem:[#allocation0]]
  $region57: #{tpu_custom_call.1} parent=0
    _
  %s6 = ssub.s32 1, %s4
  %s7 = scalar_select 0, %s6, %s4
  $region1: #{tpu_custom_call.1} parent=0
    #allocation2 [shape = 'u8[131072]{0}', space=vmem, size = 0x20000, scoped, tag = 'input window, operand 0']
    #allocation3 [shape = 's32[2]{0}', space=sflag, size = 0x8, scoped, tag = 'scoped memory for tpu_custom_call.1']
    #allocation4 [shape = 's32[2]{0}', space=sflag, size = 0x8, scoped, tag = 'scoped memory for tpu_custom_call.1']
    #allocation5 [shape = 'u8[24576]{0}', space=vmem, size = 0x6000, scoped, tag = 'input window, operand 1, single buffered']
    #allocation6 [shape = 's32[1]{0}', space=sflag, size = 0x4, scoped, tag = 'scoped memory for tpu_custom_call.1']
    #allocation7 [shape = 'u8[262144]{0}', space=vmem, size = 0x40000, scoped, tag = 'input window, operand 2, single buffered']
    #allocation8 [shape = 'u8[131072]{0}', space=vmem, size = 0x20000, scoped, tag = 'output window, operand 0']
    %8 = vsyncpa [#allocation3], 0
    %s9 = scalar_lea.sflag [#allocation3], 1
    %10 = vsyncpa %s9, 0
    %11 = vsyncpa [#allocation6], 0
    %12 = vsyncpa [#allocation4], 0
    %s13 = scalar_lea.sflag [#allocation4], 1
    %14 = vsyncpa %s13, 0
    loop: start=0, step=1, limit=4
    $region2: #{tpu_custom_call.1} parent=1 // loop_pre_header
      _
    $region3: #{tpu_custom_call.1} parent=1 // loop_header
      %s16 = sphi 0, %s20
      %p17 = scmp.ge.s32.totalorder %s16, 4
      %s26 = sphi 0, %s28
      %s29 = sphi 0, %s26
      %s30 = sphi 0, %s29
      %s46 = sphi 0, %s30
      %s50 = sphi 0, %s50
      %s52 = sphi 0, %s50
      %s53 = sphi 0, %s52
      %s67 = sphi 0, %s53
      %s71 = sphi 0, %s71
      %s73 = sphi 0, %s71
      %s74 = sphi 0, %s73
      %s88 = sphi 0, %s74
      %s94 = sphi 0, %s96
      %s97 = sphi 0, %s94
      %s98 = sphi 0, %s97
      %s114 = sphi 0, %s98
    $region4: #{tpu_custom_call.1} parent=1 // loop_header_branch
      %19 = sbr.rel (%p17) target = $region8
    $region5: #{tpu_custom_call.1} parent=1 // loop_body
      %s21 = ssub.s32 %s16, 1
      %s22 = ssub.s32 %s16, 2
      %s23 = sadd.s32 %s16, 1
      %s24 = ssub.s32 %s16, %s23
      %p25 = scmp.eq.s32.totalorder %s24, 0
      %s27 = sadd.s32 %s26, 1
      %s28 = scalar_select %p25, %s26, %s27
      %p31 = pneg %p25
      %p32 = scmp.eq.s32.totalorder %s16, 1
      %p33 = por %p31, %p32
      %p34 = scmp.ne.s32.totalorder %s26, %s29
      %p35 = scmp.eq.s32.totalorder %s16, 0
      %p36 = por %p34, %p35
      %p37 = scmp.ne.s32.totalorder %s26, %s29
      %p38 = scmp.eq.s32.totalorder %s21, 1
      %p39 = por %p37, %p38
      %p40 = scmp.ne.s32.totalorder %s29, %s30
      %p41 = scmp.eq.s32.totalorder %s21, 0
      %p42 = por %p40, %p41
      %p43 = scmp.ne.s32.totalorder %s29, %s30
      %p44 = scmp.eq.s32.totalorder %s22, 1
      %p45 = por %p43, %p44
      %p47 = scmp.ne.s32.totalorder %s30, %s46
      %p48 = scmp.eq.s32.totalorder %s22, 0
      %p49 = por %p47, %p48
      %s51 = sadd.s32 %s50, 1
      %p54 = scmp.eq.s32.totalorder %s16, 1
      %p55 = scmp.ne.s32.totalorder %s50, %s52
      %p56 = scmp.eq.s32.totalorder %s16, 0
      %p57 = por %p55, %p56
      %p58 = scmp.ne.s32.totalorder %s50, %s52
      %p59 = scmp.eq.s32.totalorder %s21, 1
      %p60 = por %p58, %p59
      %p61 = scmp.ne.s32.totalorder %s52, %s53
      %p62 = scmp.eq.s32.totalorder %s21, 0
      %p63 = por %p61, %p62
      %p64 = scmp.ne.s32.totalorder %s52, %s53
      %p65 = scmp.eq.s32.totalorder %s22, 1
      %p66 = por %p64, %p65
      %p68 = scmp.ne.s32.totalorder %s53, %s67
      %p69 = scmp.eq.s32.totalorder %s22, 0
      %p70 = por %p68, %p69
      %s72 = sadd.s32 %s71, 1
      %p75 = scmp.eq.s32.totalorder %s16, 1
      %p76 = scmp.ne.s32.totalorder %s71, %s73
      %p77 = scmp.eq.s32.totalorder %s16, 0
      %p78 = por %p76, %p77
      %p79 = scmp.ne.s32.totalorder %s71, %s73
      %p80 = scmp.eq.s32.totalorder %s21, 1
      %p81 = por %p79, %p80
      %p82 = scmp.ne.s32.totalorder %s73, %s74
      %p83 = scmp.eq.s32.totalorder %s21, 0
      %p84 = por %p82, %p83
      %p85 = scmp.ne.s32.totalorder %s73, %s74
      %p86 = scmp.eq.s32.totalorder %s22, 1
      %p87 = por %p85, %p86
      %p89 = scmp.ne.s32.totalorder %s74, %s88
      %p90 = scmp.eq.s32.totalorder %s22, 0
      %p91 = por %p89, %p90
      %s92 = ssub.s32 %s16, %s23
      %p93 = scmp.eq.s32.totalorder %s92, 0
      %s95 = sadd.s32 %s94, 1
      %s96 = scalar_select %p93, %s94, %s95
      %p99 = pneg %p93
      %p100 = scmp.eq.s32.totalorder %s16, 1
      %p101 = por %p99, %p100
      %p102 = scmp.ne.s32.totalorder %s94, %s97
      %p103 = scmp.eq.s32.totalorder %s16, 0
      %p104 = por %p102, %p103
      %p105 = scmp.ne.s32.totalorder %s94, %s97
      %p106 = scmp.eq.s32.totalorder %s21, 1
      %p107 = por %p105, %p106
      %p108 = scmp.ne.s32.totalorder %s97, %s98
      %p109 = scmp.eq.s32.totalorder %s21, 0
      %p110 = por %p108, %p109
      %p111 = scmp.ne.s32.totalorder %s97, %s98
      %p112 = scmp.eq.s32.totalorder %s22, 1
      %p113 = por %p111, %p112
      %p115 = scmp.ne.s32.totalorder %s98, %s114
      %p116 = scmp.eq.s32.totalorder %s22, 0
      %p117 = por %p115, %p116
      %p118 = scmp.le.s32.totalorder 1, %s16
      %p119 = scmp.lt.s32.totalorder %s16, 3
      %p120 = pnand %p118, %p119
      %p121 = pneg %p120
      // Predicated region
      $region9: #{tpu_custom_call.1} parent=5 // pred_check
        _
      $region10: #{tpu_custom_call.1} parent=5 // pred_check_branch
        %123 = sbr.rel (%p120) target = $region12
      $region11: #{tpu_custom_call.1} parent=5 // pred_region
        %s124 = ssub.s32 %s16, 1
        // Predicated region
        $region13: #{tpu_custom_call.1} parent=11 // pred_check
          %p125 = pneg %p63
        $region14: #{tpu_custom_call.1} parent=11 // pred_check_branch
          %127 = sbr.rel (%p125) target = $region16
        $region15: #{tpu_custom_call.1} parent=11 // pred_region
          %s129 = ssub.s32 768, 768
          %130 = vsyncadd [#allocation6], %s129
          %s131 = sshll.u32 [#allocation5], 4
          %s132 = int_to_ptr.vmem [resolvable:$true] %s131
          %137 = dma.hbm_to_vmem [thread:$0]  %s1, 768, %s132, [#allocation6], 192, 192, 12
        $region16: #{tpu_custom_call.1} parent=11 // pred_fallthru
          _
        // Predicated region
        $region17: #{tpu_custom_call.1} parent=11 // pred_check
          %p138 = pneg %p84
        $region18: #{tpu_custom_call.1} parent=11 // pred_check_branch
          %140 = sbr.rel (%p138) target = $region20
        $region19: #{tpu_custom_call.1} parent=11 // pred_region
          %s142 = ssub.s32 8192, 8192
          %143 = vsyncadd [#allocation6], %s142
          %s144 = sshll.u32 [#allocation7], 4
          %s145 = int_to_ptr.vmem [resolvable:$true] %s144
          %150 = dma.hbm_to_vmem [thread:$0]  %s2, 8192, %s145, [#allocation6], 256, 256, 16
        $region20: #{tpu_custom_call.1} parent=11 // pred_fallthru
          _
      $region12: #{tpu_custom_call.1} parent=5 // pred_fallthru
        _
      %p151 = scmp.lt.s32.totalorder %s16, 2
      // Predicated region
      $region21: #{tpu_custom_call.1} parent=5 // pred_check
        %p152 = pneg %p151
      $region22: #{tpu_custom_call.1} parent=5 // pred_check_branch
        %154 = sbr.rel (%p152) target = $region24
      $region23: #{tpu_custom_call.1} parent=5 // pred_region
        // Predicated region
        $region25: #{tpu_custom_call.1} parent=23 // pred_check
          %p155 = pneg %p36
        $region26: #{tpu_custom_call.1} parent=23 // pred_check_branch
          %157 = sbr.rel (%p155) target = $region28
        $region27: #{tpu_custom_call.1} parent=23 // pred_region
          %s158 = sand.u32 %s26, 1
          %s159 = scalar_lea.sflag [#allocation3], %s158
          %s160 = sand.u32 %s26, 1
          %s161 = smul.addr %s160, 128
          %s162 = scalar_lea.vmem [#allocation2], %s161
          %s163 = smul.u32 16, %s16
          %s165 = ssub.s32 2048, 2048
          %166 = vsyncadd %s159, %s165
          %s167 = smul.addr %s163, 2
          %s168 = smul.addr %s167, 64
          %s169 = scalar_lea.hbm %s0, %s168
          %s170 = sshll.u32 %s162, 4
          %s171 = int_to_ptr.vmem [resolvable:$true] %s170
          %176 = dma.hbm_to_vmem [thread:$0]  %s169, 2048, %s171, %s159, 64, 64, 4
        $region28: #{tpu_custom_call.1} parent=23 // pred_fallthru
          _
      $region24: #{tpu_custom_call.1} parent=5 // pred_fallthru
        _
      %p177 = scmp.le.s32.totalorder 1, %s16
      %p178 = scmp.lt.s32.totalorder %s16, 3
      %p179 = pnand %p177, %p178
      %p180 = pneg %p179
      // Predicated region
      $region29: #{tpu_custom_call.1} parent=5 // pred_check
        _
      $region30: #{tpu_custom_call.1} parent=5 // pred_check_branch
        %182 = sbr.rel (%p179) target = $region32
      $region31: #{tpu_custom_call.1} parent=5 // pred_region
        %s183 = ssub.s32 %s16, 1
        %s184 = sand.u32 %s29, 1
        %s185 = scalar_lea.sflag [#allocation3], %s184
        %s186 = sand.u32 %s29, 1
        %s187 = smul.addr %s186, 128
        %s188 = scalar_lea.vmem [#allocation2], %s187
        // Predicated region
        $region33: #{tpu_custom_call.1} parent=31 // pred_check
          %p189 = pneg %p42
        $region34: #{tpu_custom_call.1} parent=31 // pred_check_branch
          %191 = sbr.rel (%p189) target = $region36
        $region35: #{tpu_custom_call.1} parent=31 // pred_region
          %192 = dma.done %s185, 2048
        $region36: #{tpu_custom_call.1} parent=31 // pred_fallthru
          _
        // Predicated region
        $region37: #{tpu_custom_call.1} parent=31 // pred_check
          %p193 = pneg %p63
        $region38: #{tpu_custom_call.1} parent=31 // pred_check_branch
          %195 = sbr.rel (%p193) target = $region40
        $region39: #{tpu_custom_call.1} parent=31 // pred_region
          %196 = dma.done [#allocation6], 768
        $region40: #{tpu_custom_call.1} parent=31 // pred_fallthru
          _
        // Predicated region
        $region41: #{tpu_custom_call.1} parent=31 // pred_check
          %p197 = pneg %p84
        $region42: #{tpu_custom_call.1} parent=31 // pred_check_branch
          %199 = sbr.rel (%p197) target = $region44
        $region43: #{tpu_custom_call.1} parent=31 // pred_region
          %200 = dma.done [#allocation6], 8192
        $region44: #{tpu_custom_call.1} parent=31 // pred_fallthru
          _
        %s201 = sand.u32 %s29, 1
        %s202 = scalar_lea.sflag [#allocation3], %s201
        %s203 = sand.u32 %s29, 1
        %s204 = smul.addr %s203, 128
        %s205 = scalar_lea.vmem [#allocation2], %s204
        %p206 = pneg %p42
        %p207 = pneg %p39
        %p208 = pneg %p63
        %p209 = pneg %p60
        %p210 = pneg %p84
        %p211 = pneg %p81
        %p212 = pneg %p110
        %p213 = pneg %p107
        %s214 = sand.u32 %s97, 1
        %s215 = scalar_lea.sflag [#allocation4], %s214
        %s216 = sand.u32 %s97, 1
        %s217 = smul.addr %s216, 128
        %s218 = scalar_lea.vmem [#allocation8], %s217
        %s219 = smul.u32 16, %s21
        %s220 = smul.u32 16, %s21
        %v222 = vld [vmem:[%s188] sm:$0xf]
        %v223 = vld [vmem:[%s188 + $0x4] sm:$0xf]
        %v224 = vld [vmem:[%s188 + $0x8] sm:$0xf]
        %v225 = vld [vmem:[%s188 + $0xc] sm:$0xf]
        %v226 = vld [vmem:[%s188 + $0x10] sm:$0xf]
        %v227 = vld [vmem:[%s188 + $0x14] sm:$0xf]
        %v228 = vld [vmem:[%s188 + $0x18] sm:$0xf]
        %v229 = vld [vmem:[%s188 + $0x1c] sm:$0xf]
        %v230 = vld [vmem:[%s188 + $0x20] sm:$0xf]
        %v231 = vld [vmem:[%s188 + $0x24] sm:$0xf]
        %v232 = vld [vmem:[%s188 + $0x28] sm:$0xf]
        %v233 = vld [vmem:[%s188 + $0x2c] sm:$0xf]
        %v234 = vld [vmem:[%s188 + $0x30] sm:$0xf]
        %v235 = vld [vmem:[%s188 + $0x34] sm:$0xf]
        %v236 = vld [vmem:[%s188 + $0x38] sm:$0xf]
        %v237 = vld [vmem:[%s188 + $0x3c] sm:$0xf]
        %v238 = vld [vmem:[%s188 + $0x40] sm:$0xf]
        %v239 = vld [vmem:[%s188 + $0x44] sm:$0xf]
        %v240 = vld [vmem:[%s188 + $0x48] sm:$0xf]
        %v241 = vld [vmem:[%s188 + $0x4c] sm:$0xf]
        %v242 = vld [vmem:[%s188 + $0x50] sm:$0xf]
        %v243 = vld [vmem:[%s188 + $0x54] sm:$0xf]
        %v244 = vld [vmem:[%s188 + $0x58] sm:$0xf]
        %v245 = vld [vmem:[%s188 + $0x5c] sm:$0xf]
        %v246 = vld [vmem:[%s188 + $0x60] sm:$0xf]
        %v247 = vld [vmem:[%s188 + $0x64] sm:$0xf]
        %v248 = vld [vmem:[%s188 + $0x68] sm:$0xf]
        %v249 = vld [vmem:[%s188 + $0x6c] sm:$0xf]
        %v250 = vld [vmem:[%s188 + $0x70] sm:$0xf]
        %v251 = vld [vmem:[%s188 + $0x74] sm:$0xf]
        %v252 = vld [vmem:[%s188 + $0x78] sm:$0xf]
        %v253 = vld [vmem:[%s188 + $0x7c] sm:$0xf]
        %v254 = vld [vmem:[#allocation5] sm:$0xff]
        %v255 = vld [vmem:[#allocation5 + $0x8] sm:$0xf]
        %v256 = vld [vmem:[#allocation5 + $0xc] sm:$0xff]
        %v257 = vld [vmem:[#allocation5 + $0x14] sm:$0xf]
        %v258 = vld [vmem:[#allocation5 + $0x18] sm:$0xff]
        %v259 = vld [vmem:[#allocation5 + $0x20] sm:$0xf]
        %v260 = vld [vmem:[#allocation5 + $0x24] sm:$0xff]
        %v261 = vld [vmem:[#allocation5 + $0x2c] sm:$0xf]
        %v294 = vunpack.c.l.b16 %v222
        %v295 = vunpack.c.l.b16 %v223
        %v296 = vunpack.c.l.b16 %v224
        %v297 = vunpack.c.l.b16 %v225
        %v298 = vunpack.c.l.b16 %v226
        %v299 = vunpack.c.l.b16 %v227
        %v300 = vunpack.c.l.b16 %v228
        %v301 = vunpack.c.l.b16 %v229
        %v302 = vunpack.c.l.b16 %v230
        %v303 = vunpack.c.l.b16 %v231
        %v304 = vunpack.c.l.b16 %v232
        %v305 = vunpack.c.l.b16 %v233
        %v306 = vunpack.c.l.b16 %v234
        %v307 = vunpack.c.l.b16 %v235
        %v308 = vunpack.c.l.b16 %v236
        %v309 = vunpack.c.l.b16 %v237
        %v310 = vunpack.c.l.b16 %v238
        %v311 = vunpack.c.l.b16 %v239
        %v312 = vunpack.c.l.b16 %v240
        %v313 = vunpack.c.l.b16 %v241
        %v314 = vunpack.c.l.b16 %v242
        %v315 = vunpack.c.l.b16 %v243
        %v316 = vunpack.c.l.b16 %v244
        %v317 = vunpack.c.l.b16 %v245
        %v318 = vunpack.c.l.b16 %v246
        %v319 = vunpack.c.l.b16 %v247
        %v320 = vunpack.c.l.b16 %v248
        %v321 = vunpack.c.l.b16 %v249
        %v322 = vunpack.c.l.b16 %v250
        %v323 = vunpack.c.l.b16 %v251
        %v324 = vunpack.c.l.b16 %v252
        %v325 = vunpack.c.l.b16 %v253
        %v326 = vpack.c.b16 %v295, %v294
        %v327 = vpack.c.b16 %v297, %v296
        %v328 = vpack.c.b16 %v299, %v298
        %v329 = vpack.c.b16 %v301, %v300
        %v330 = vpack.c.b16 %v303, %v302
        %v331 = vpack.c.b16 %v305, %v304
        %v332 = vpack.c.b16 %v307, %v306
        %v333 = vpack.c.b16 %v309, %v308
        %v334 = vpack.c.b16 %v311, %v310
        %v335 = vpack.c.b16 %v313, %v312
        %v336 = vpack.c.b16 %v315, %v314
        %v337 = vpack.c.b16 %v317, %v316
        %v338 = vpack.c.b16 %v319, %v318
        %v339 = vpack.c.b16 %v321, %v320
        %v340 = vpack.c.b16 %v323, %v322
        %v341 = vpack.c.b16 %v325, %v324
        %v350 = vunpack.c.l.b16 %v254
        %v351 = vunpack.c.h.b16 %v254
        %v352 = vunpack.c.l.b16 %v255
        %v353 = vunpack.c.l.b16 %v256
        %v354 = vunpack.c.h.b16 %v256
        %v355 = vunpack.c.l.b16 %v257
        %v356 = vunpack.c.l.b16 %v258
        %v357 = vunpack.c.h.b16 %v258
        %v358 = vunpack.c.l.b16 %v259
        %v359 = vunpack.c.l.b16 %v260
        %v360 = vunpack.c.h.b16 %v260
        %v361 = vunpack.c.l.b16 %v261
        %v362 = vpack.c.b16 %v353, %v350
        %v363 = vpack.c.b16 %v354, %v351
        %v364 = vpack.c.b16 %v355, %v352
        %v365 = vpack.c.b16 %v359, %v356
        %v366 = vpack.c.b16 %v360, %v357
        %v367 = vpack.c.b16 %v361, %v358
        %vm374 = vcmask 261120
        %v376 = vsel %vm374, %v326, 0
        %v379 = vsel %vm374, %v327, 0
        %v382 = vsel %vm374, %v328, 0
        %v385 = vsel %vm374, %v329, 0
        %v388 = vsel %vm374, %v330, 0
        %v391 = vsel %vm374, %v331, 0
        %v394 = vsel %vm374, %v332, 0
        %v397 = vsel %vm374, %v333, 0
        %v400 = vsel %vm374, %v334, 0
        %v403 = vsel %vm374, %v335, 0
        %v406 = vsel %vm374, %v336, 0
        %v409 = vsel %vm374, %v337, 0
        %v412 = vsel %vm374, %v338, 0
        %v415 = vsel %vm374, %v339, 0
        %v418 = vsel %vm374, %v340, 0
        %v421 = vsel %vm374, %v341, 0
        %423 = vmatprep.subr.bf16.mxu0 0
        %424 = vmatpush1.bf16.msra.mxu0 0
        %425 = vmatprep.subr.bf16.mxu0 0
        %426 = vmatpush1.bf16.msra.mxu0 0
        %427 = vmatprep.subr.bf16.mxu0 0
        %428 = vmatpush1.bf16.msra.mxu0 0
        %429 = vmatprep.subr.bf16.mxu0 0
        %430 = vmatpush1.bf16.msra.mxu0 0
        %431 = vmatprep.subr.bf16.mxu0 0
        %432 = vmatpush1.bf16.msra.mxu0 0
        %433 = vmatprep.subr.bf16.mxu0 0
        %434 = vmatpush1.bf16.msra.mxu0 0
        %435 = vmatprep.subr.bf16.mxu0 %v366
        %436 = vmatpush1.bf16.msra.mxu0 %v365
        %437 = vmatprep.subr.bf16.mxu0 %v363
        %438 = vmatpush1.bf16.msra.mxu0 %v362
        %439 = vmatprep.subr.bf16.mxu0 0
        %440 = vmatpush2.bf16.msra.mxu0 0
        %441 = vmatprep.subr.bf16.mxu0 0
        %442 = vmatpush2.bf16.msra.mxu0 0
        %443 = vmatprep.subr.bf16.mxu0 0
        %444 = vmatpush2.bf16.msra.mxu0 0
        %445 = vmatprep.subr.bf16.mxu0 0
        %446 = vmatpush2.bf16.msra.mxu0 0
        %447 = vmatprep.subr.bf16.mxu0 0
        %448 = vmatpush2.bf16.msra.mxu0 0
        %449 = vmatprep.subr.bf16.mxu0 0
        %450 = vmatpush2.bf16.msra.mxu0 0
        %451 = vmatprep.subr.bf16.mxu0 0
        %452 = vmatpush2.bf16.msra.mxu0 0
        %453 = vmatprep.subr.bf16.mxu0 0
        %454 = vmatpush2.bf16.msra.mxu0 0
        %455 = vmatprep.mubr.bf16.mxu0 0
        %456 = vmatmul.mubr.bf16.gmra.mxu0 %v376
        %v457 = vpop.f32.mrf.mxu0
        %v458 = vadd.f32 0.0, %v457
        %v459 = vpop.f32.mrf.mxu0
        %v460 = vadd.f32 0.0, %v459
        %v461 = vpop.f32.mrf.mxu0
        %v462 = vadd.f32 0.0, %v461
        %v463 = vpop.f32.mrf.mxu0
        %v464 = vadd.f32 0.0, %v463
        %465 = vmatprep.mubr.bf16.mxu0 0
        %466 = vmatmul.mubr.bf16.gmra.mxu0 %v379
        %v467 = vpop.f32.mrf.mxu0
        %v468 = vadd.f32 0.0, %v467
        %v469 = vpop.f32.mrf.mxu0
        %v470 = vadd.f32 0.0, %v469
        %v471 = vpop.f32.mrf.mxu0
        %v472 = vadd.f32 0.0, %v471
        %v473 = vpop.f32.mrf.mxu0
        %v474 = vadd.f32 0.0, %v473
        %475 = vmatprep.mubr.bf16.mxu0 0
        %476 = vmatmul.mubr.bf16.gmra.mxu0 %v382
        %v477 = vpop.f32.mrf.mxu0
        %v478 = vadd.f32 0.0, %v477
        %v479 = vpop.f32.mrf.mxu0
        %v480 = vadd.f32 0.0, %v479
        %v481 = vpop.f32.mrf.mxu0
        %v482 = vadd.f32 0.0, %v481
        %v483 = vpop.f32.mrf.mxu0
        %v484 = vadd.f32 0.0, %v483
        %485 = vmatprep.mubr.bf16.mxu0 0
        %486 = vmatmul.mubr.bf16.gmra.mxu0 %v385
        %v487 = vpop.f32.mrf.mxu0
        %v488 = vadd.f32 0.0, %v487
        %v489 = vpop.f32.mrf.mxu0
        %v490 = vadd.f32 0.0, %v489
        %v491 = vpop.f32.mrf.mxu0
        %v492 = vadd.f32 0.0, %v491
        %v493 = vpop.f32.mrf.mxu0
        %v494 = vadd.f32 0.0, %v493
        %495 = vmatprep.mubr.bf16.mxu0 0
        %496 = vmatmul.mubr.bf16.gmra.mxu0 %v388
        %v497 = vpop.f32.mrf.mxu0
        %v498 = vadd.f32 0.0, %v497
        %v499 = vpop.f32.mrf.mxu0
        %v500 = vadd.f32 0.0, %v499
        %v501 = vpop.f32.mrf.mxu0
        %v502 = vadd.f32 0.0, %v501
        %v503 = vpop.f32.mrf.mxu0
        %v504 = vadd.f32 0.0, %v503
        %505 = vmatprep.mubr.bf16.mxu0 0
        %506 = vmatmul.mubr.bf16.gmra.mxu0 %v391
        %v507 = vpop.f32.mrf.mxu0
        %v508 = vadd.f32 0.0, %v507
        %v509 = vpop.f32.mrf.mxu0
        %v510 = vadd.f32 0.0, %v509
        %v511 = vpop.f32.mrf.mxu0
        %v512 = vadd.f32 0.0, %v511
        %v513 = vpop.f32.mrf.mxu0
        %v514 = vadd.f32 0.0, %v513
        %515 = vmatprep.mubr.bf16.mxu0 0
        %516 = vmatmul.mubr.bf16.gmra.mxu0 %v394
        %v517 = vpop.f32.mrf.mxu0
        %v518 = vadd.f32 0.0, %v517
        %v519 = vpop.f32.mrf.mxu0
        %v520 = vadd.f32 0.0, %v519
        %v521 = vpop.f32.mrf.mxu0
        %v522 = vadd.f32 0.0, %v521
        %v523 = vpop.f32.mrf.mxu0
        %v524 = vadd.f32 0.0, %v523
        %525 = vmatprep.mubr.bf16.mxu0 0
        %526 = vmatmul.mubr.bf16.gmra.mxu0 %v397
        %v527 = vpop.f32.mrf.mxu0
        %v528 = vadd.f32 0.0, %v527
        %v529 = vpop.f32.mrf.mxu0
        %v530 = vadd.f32 0.0, %v529
        %v531 = vpop.f32.mrf.mxu0
        %v532 = vadd.f32 0.0, %v531
        %v533 = vpop.f32.mrf.mxu0
        %v534 = vadd.f32 0.0, %v533
        %535 = vmatprep.mubr.bf16.mxu0 0
        %536 = vmatmul.mubr.bf16.gmra.mxu0 %v400
        %v537 = vpop.f32.mrf.mxu0
        %v538 = vadd.f32 0.0, %v537
        %v539 = vpop.f32.mrf.mxu0
        %v540 = vadd.f32 0.0, %v539
        %v541 = vpop.f32.mrf.mxu0
        %v542 = vadd.f32 0.0, %v541
        %v543 = vpop.f32.mrf.mxu0
        %v544 = vadd.f32 0.0, %v543
        %545 = vmatprep.mubr.bf16.mxu0 0
        %546 = vmatmul.mubr.bf16.gmra.mxu0 %v403
        %v547 = vpop.f32.mrf.mxu0
        %v548 = vadd.f32 0.0, %v547
        %v549 = vpop.f32.mrf.mxu0
        %v550 = vadd.f32 0.0, %v549
        %v551 = vpop.f32.mrf.mxu0
        %v552 = vadd.f32 0.0, %v551
        %v553 = vpop.f32.mrf.mxu0
        %v554 = vadd.f32 0.0, %v553
        %555 = vmatprep.mubr.bf16.mxu0 0
        %556 = vmatmul.mubr.bf16.gmra.mxu0 %v406
        %v557 = vpop.f32.mrf.mxu0
        %v558 = vadd.f32 0.0, %v557
        %v559 = vpop.f32.mrf.mxu0
        %v560 = vadd.f32 0.0, %v559
        %v561 = vpop.f32.mrf.mxu0
        %v562 = vadd.f32 0.0, %v561
        %v563 = vpop.f32.mrf.mxu0
        %v564 = vadd.f32 0.0, %v563
        %565 = vmatprep.mubr.bf16.mxu0 0
        %566 = vmatmul.mubr.bf16.gmra.mxu0 %v409
        %v567 = vpop.f32.mrf.mxu0
        %v568 = vadd.f32 0.0, %v567
        %v569 = vpop.f32.mrf.mxu0
        %v570 = vadd.f32 0.0, %v569
        %v571 = vpop.f32.mrf.mxu0
        %v572 = vadd.f32 0.0, %v571
        %v573 = vpop.f32.mrf.mxu0
        %v574 = vadd.f32 0.0, %v573
        %575 = vmatprep.mubr.bf16.mxu0 0
        %576 = vmatmul.mubr.bf16.gmra.mxu0 %v412
        %v577 = vpop.f32.mrf.mxu0
        %v578 = vadd.f32 0.0, %v577
        %v579 = vpop.f32.mrf.mxu0
        %v580 = vadd.f32 0.0, %v579
        %v581 = vpop.f32.mrf.mxu0
        %v582 = vadd.f32 0.0, %v581
        %v583 = vpop.f32.mrf.mxu0
        %v584 = vadd.f32 0.0, %v583
        %585 = vmatprep.mubr.bf16.mxu0 0
        %586 = vmatmul.mubr.bf16.gmra.mxu0 %v415
        %v587 = vpop.f32.mrf.mxu0
        %v588 = vadd.f32 0.0, %v587
        %v589 = vpop.f32.mrf.mxu0
        %v590 = vadd.f32 0.0, %v589
        %v591 = vpop.f32.mrf.mxu0
        %v592 = vadd.f32 0.0, %v591
        %v593 = vpop.f32.mrf.mxu0
        %v594 = vadd.f32 0.0, %v593
        %595 = vmatprep.mubr.bf16.mxu0 0
        %596 = vmatmul.mubr.bf16.gmra.mxu0 %v418
        %v597 = vpop.f32.mrf.mxu0
        %v598 = vadd.f32 0.0, %v597
        %v599 = vpop.f32.mrf.mxu0
        %v600 = vadd.f32 0.0, %v599
        %v601 = vpop.f32.mrf.mxu0
        %v602 = vadd.f32 0.0, %v601
        %v603 = vpop.f32.mrf.mxu0
        %v604 = vadd.f32 0.0, %v603
        %605 = vmatprep.mubr.bf16.mxu0 0
        %606 = vmatmul.mubr.bf16.gmra.mxu0 %v421
        %v607 = vpop.f32.mrf.mxu0
        %v608 = vadd.f32 0.0, %v607
        %v609 = vpop.f32.mrf.mxu0
        %v610 = vadd.f32 0.0, %v609
        %v611 = vpop.f32.mrf.mxu0
        %v612 = vadd.f32 0.0, %v611
        %v613 = vpop.f32.mrf.mxu0
        %v614 = vadd.f32 0.0, %v613
        %615 = vdwg.mxu0
        %616 = vmatprep.subr.bf16.mxu0 0
        %617 = vmatpush1.bf16.msra.mxu0 0
        %618 = vmatprep.subr.bf16.mxu0 0
        %619 = vmatpush1.bf16.msra.mxu0 0
        %620 = vmatprep.subr.bf16.mxu0 0
        %621 = vmatpush1.bf16.msra.mxu0 0
        %622 = vmatprep.subr.bf16.mxu0 0
        %623 = vmatpush1.bf16.msra.mxu0 0
        %624 = vmatprep.subr.bf16.mxu0 0
        %625 = vmatpush1.bf16.msra.mxu0 0
        %626 = vmatprep.subr.bf16.mxu0 0
        %627 = vmatpush1.bf16.msra.mxu0 0
        %628 = vmatprep.subr.bf16.mxu0 0
        %629 = vmatpush1.bf16.msra.mxu0 %v367
        %630 = vmatprep.subr.bf16.mxu0 0
        %631 = vmatpush1.bf16.msra.mxu0 %v364
        %632 = vmatprep.subr.bf16.mxu0 0
        %633 = vmatpush2.bf16.msra.mxu0 0
        %634 = vmatprep.subr.bf16.mxu0 0
        %635 = vmatpush2.bf16.msra.mxu0 0
        %636 = vmatprep.subr.bf16.mxu0 0
        %637 = vmatpush2.bf16.msra.mxu0 0
        %638 = vmatprep.subr.bf16.mxu0 0
        %639 = vmatpush2.bf16.msra.mxu0 0
        %640 = vmatprep.subr.bf16.mxu0 0
        %641 = vmatpush2.bf16.msra.mxu0 0
        %642 = vmatprep.subr.bf16.mxu0 0
        %643 = vmatpush2.bf16.msra.mxu0 0
        %644 = vmatprep.subr.bf16.mxu0 0
        %645 = vmatpush2.bf16.msra.mxu0 0
        %646 = vmatprep.subr.bf16.mxu0 0
        %647 = vmatpush2.bf16.msra.mxu0 0
        %648 = vmatprep.mubr.bf16.mxu0 0
        %649 = vmatmul.mubr.bf16.gmra.mxu0 %v376
        %v650 = vpop.f32.mrf.mxu0
        %v651 = vadd.f32 0.0, %v650
        %v652 = vpop.f32.mrf.mxu0
        %v653 = vpop.f32.mrf.mxu0
        %v654 = vadd.f32 0.0, %v653
        %v655 = vpop.f32.mrf.mxu0
        %656 = vmatprep.mubr.bf16.mxu0 0
        %657 = vmatmul.mubr.bf16.gmra.mxu0 %v379
        %v658 = vpop.f32.mrf.mxu0
        %v659 = vadd.f32 0.0, %v658
        %v660 = vpop.f32.mrf.mxu0
        %v661 = vpop.f32.mrf.mxu0
        %v662 = vadd.f32 0.0, %v661
        %v663 = vpop.f32.mrf.mxu0
        %664 = vmatprep.mubr.bf16.mxu0 0
        %665 = vmatmul.mubr.bf16.gmra.mxu0 %v382
        %v666 = vpop.f32.mrf.mxu0
        %v667 = vadd.f32 0.0, %v666
        %v668 = vpop.f32.mrf.mxu0
        %v669 = vpop.f32.mrf.mxu0
        %v670 = vadd.f32 0.0, %v669
        %v671 = vpop.f32.mrf.mxu0
        %672 = vmatprep.mubr.bf16.mxu0 0
        %673 = vmatmul.mubr.bf16.gmra.mxu0 %v385
        %v674 = vpop.f32.mrf.mxu0
        %v675 = vadd.f32 0.0, %v674
        %v676 = vpop.f32.mrf.mxu0
        %v677 = vpop.f32.mrf.mxu0
        %v678 = vadd.f32 0.0, %v677
        %v679 = vpop.f32.mrf.mxu0
        %680 = vmatprep.mubr.bf16.mxu0 0
        %681 = vmatmul.mubr.bf16.gmra.mxu0 %v388
        %v682 = vpop.f32.mrf.mxu0
        %v683 = vadd.f32 0.0, %v682
        %v684 = vpop.f32.mrf.mxu0
        %v685 = vpop.f32.mrf.mxu0
        %v686 = vadd.f32 0.0, %v685
        %v687 = vpop.f32.mrf.mxu0
        %688 = vmatprep.mubr.bf16.mxu0 0
        %689 = vmatmul.mubr.bf16.gmra.mxu0 %v391
        %v690 = vpop.f32.mrf.mxu0
        %v691 = vadd.f32 0.0, %v690
        %v692 = vpop.f32.mrf.mxu0
        %v693 = vpop.f32.mrf.mxu0
        %v694 = vadd.f32 0.0, %v693
        %v695 = vpop.f32.mrf.mxu0
        %696 = vmatprep.mubr.bf16.mxu0 0
        %697 = vmatmul.mubr.bf16.gmra.mxu0 %v394
        %v698 = vpop.f32.mrf.mxu0
        %v699 = vadd.f32 0.0, %v698
        %v700 = vpop.f32.mrf.mxu0
        %v701 = vpop.f32.mrf.mxu0
        %v702 = vadd.f32 0.0, %v701
        %v703 = vpop.f32.mrf.mxu0
        %704 = vmatprep.mubr.bf16.mxu0 0
        %705 = vmatmul.mubr.bf16.gmra.mxu0 %v397
        %v706 = vpop.f32.mrf.mxu0
        %v707 = vadd.f32 0.0, %v706
        %v708 = vpop.f32.mrf.mxu0
        %v709 = vpop.f32.mrf.mxu0
        %v710 = vadd.f32 0.0, %v709
        %v711 = vpop.f32.mrf.mxu0
        %712 = vmatprep.mubr.bf16.mxu0 0
        %713 = vmatmul.mubr.bf16.gmra.mxu0 %v400
        %v714 = vpop.f32.mrf.mxu0
        %v715 = vadd.f32 0.0, %v714
        %v716 = vpop.f32.mrf.mxu0
        %v717 = vpop.f32.mrf.mxu0
        %v718 = vadd.f32 0.0, %v717
        %v719 = vpop.f32.mrf.mxu0
        %720 = vmatprep.mubr.bf16.mxu0 0
        %721 = vmatmul.mubr.bf16.gmra.mxu0 %v403
        %v722 = vpop.f32.mrf.mxu0
        %v723 = vadd.f32 0.0, %v722
        %v724 = vpop.f32.mrf.mxu0
        %v725 = vpop.f32.mrf.mxu0
        %v726 = vadd.f32 0.0, %v725
        %v727 = vpop.f32.mrf.mxu0
        %728 = vmatprep.mubr.bf16.mxu0 0
        %729 = vmatmul.mubr.bf16.gmra.mxu0 %v406
        %v730 = vpop.f32.mrf.mxu0
        %v731 = vadd.f32 0.0, %v730
        %v732 = vpop.f32.mrf.mxu0
        %v733 = vpop.f32.mrf.mxu0
        %v734 = vadd.f32 0.0, %v733
        %v735 = vpop.f32.mrf.mxu0
        %736 = vmatprep.mubr.bf16.mxu0 0
        %737 = vmatmul.mubr.bf16.gmra.mxu0 %v409
        %v738 = vpop.f32.mrf.mxu0
        %v739 = vadd.f32 0.0, %v738
        %v740 = vpop.f32.mrf.mxu0
        %v741 = vpop.f32.mrf.mxu0
        %v742 = vadd.f32 0.0, %v741
        %v743 = vpop.f32.mrf.mxu0
        %744 = vmatprep.mubr.bf16.mxu0 0
        %745 = vmatmul.mubr.bf16.gmra.mxu0 %v412
        %v746 = vpop.f32.mrf.mxu0
        %v747 = vadd.f32 0.0, %v746
        %v748 = vpop.f32.mrf.mxu0
        %v749 = vpop.f32.mrf.mxu0
        %v750 = vadd.f32 0.0, %v749
        %v751 = vpop.f32.mrf.mxu0
        %752 = vmatprep.mubr.bf16.mxu0 0
        %753 = vmatmul.mubr.bf16.gmra.mxu0 %v415
        %v754 = vpop.f32.mrf.mxu0
        %v755 = vadd.f32 0.0, %v754
        %v756 = vpop.f32.mrf.mxu0
        %v757 = vpop.f32.mrf.mxu0
        %v758 = vadd.f32 0.0, %v757
        %v759 = vpop.f32.mrf.mxu0
        %760 = vmatprep.mubr.bf16.mxu0 0
        %761 = vmatmul.mubr.bf16.gmra.mxu0 %v418
        %v762 = vpop.f32.mrf.mxu0
        %v763 = vadd.f32 0.0, %v762
        %v764 = vpop.f32.mrf.mxu0
        %v765 = vpop.f32.mrf.mxu0
        %v766 = vadd.f32 0.0, %v765
        %v767 = vpop.f32.mrf.mxu0
        %768 = vmatprep.mubr.bf16.mxu0 0
        %769 = vmatmul.mubr.bf16.gmra.mxu0 %v421
        %v770 = vpop.f32.mrf.mxu0
        %v771 = vadd.f32 0.0, %v770
        %v772 = vpop.f32.mrf.mxu0
        %v773 = vpop.f32.mrf.mxu0
        %v774 = vadd.f32 0.0, %v773
        %v775 = vpop.f32.mrf.mxu0
        %776 = vdwg.mxu0
        %v777 = vpack.c.bf16 %v462, %v458
        %v778 = vpack.c.bf16 %v472, %v468
        %v779 = vpack.c.bf16 %v482, %v478
        %v780 = vpack.c.bf16 %v492, %v488
        %v781 = vpack.c.bf16 %v502, %v498
        %v782 = vpack.c.bf16 %v512, %v508
        %v783 = vpack.c.bf16 %v522, %v518
        %v784 = vpack.c.bf16 %v532, %v528
        %v785 = vpack.c.bf16 %v542, %v538
        %v786 = vpack.c.bf16 %v552, %v548
        %v787 = vpack.c.bf16 %v562, %v558
        %v788 = vpack.c.bf16 %v572, %v568
        %v789 = vpack.c.bf16 %v582, %v578
        %v790 = vpack.c.bf16 %v592, %v588
        %v791 = vpack.c.bf16 %v602, %v598
        %v792 = vpack.c.bf16 %v612, %v608
        %v793 = vpack.c.bf16 %v464, %v460
        %v794 = vpack.c.bf16 %v474, %v470
        %v795 = vpack.c.bf16 %v484, %v480
        %v796 = vpack.c.bf16 %v494, %v490
        %v797 = vpack.c.bf16 %v504, %v500
        %v798 = vpack.c.bf16 %v514, %v510
        %v799 = vpack.c.bf16 %v524, %v520
        %v800 = vpack.c.bf16 %v534, %v530
        %v801 = vpack.c.bf16 %v544, %v540
        %v802 = vpack.c.bf16 %v554, %v550
        %v803 = vpack.c.bf16 %v564, %v560
        %v804 = vpack.c.bf16 %v574, %v570
        %v805 = vpack.c.bf16 %v584, %v580
        %v806 = vpack.c.bf16 %v594, %v590
        %v807 = vpack.c.bf16 %v604, %v600
        %v808 = vpack.c.bf16 %v614, %v610
        %v809 = vpack.c.bf16 %v654, %v651
        %v810 = vpack.c.bf16 %v662, %v659
        %v811 = vpack.c.bf16 %v670, %v667
        %v812 = vpack.c.bf16 %v678, %v675
        %v813 = vpack.c.bf16 %v686, %v683
        %v814 = vpack.c.bf16 %v694, %v691
        %v815 = vpack.c.bf16 %v702, %v699
        %v816 = vpack.c.bf16 %v710, %v707
        %v817 = vpack.c.bf16 %v718, %v715
        %v818 = vpack.c.bf16 %v726, %v723
        %v819 = vpack.c.bf16 %v734, %v731
        %v820 = vpack.c.bf16 %v742, %v739
        %v821 = vpack.c.bf16 %v750, %v747
        %v822 = vpack.c.bf16 %v758, %v755
        %v823 = vpack.c.bf16 %v766, %v763
        %v824 = vpack.c.bf16 %v774, %v771
        %v825 = vld [vmem:[#allocation7] sm:$0xff]
        %v826 = vld [vmem:[#allocation7 + $0x8] sm:$0xff]
        %v827 = vld [vmem:[#allocation7 + $0x10] sm:$0xff]
        %v828 = vld [vmem:[#allocation7 + $0x18] sm:$0xff]
        %v829 = vld [vmem:[#allocation7 + $0x20] sm:$0xff]
        %v830 = vld [vmem:[#allocation7 + $0x28] sm:$0xff]
        %v831 = vld [vmem:[#allocation7 + $0x30] sm:$0xff]
        %v832 = vld [vmem:[#allocation7 + $0x38] sm:$0xff]
        %v833 = vld [vmem:[#allocation7 + $0x40] sm:$0xff]
        %v834 = vld [vmem:[#allocation7 + $0x48] sm:$0xff]
        %v835 = vld [vmem:[#allocation7 + $0x50] sm:$0xff]
        %v836 = vld [vmem:[#allocation7 + $0x58] sm:$0xff]
        %v837 = vld [vmem:[#allocation7 + $0x60] sm:$0xff]
        %v838 = vld [vmem:[#allocation7 + $0x68] sm:$0xff]
        %v839 = vld [vmem:[#allocation7 + $0x70] sm:$0xff]
        %v840 = vld [vmem:[#allocation7 + $0x78] sm:$0xff]
        %v841 = vld [vmem:[#allocation7 + $0x80] sm:$0xff]
        %v842 = vld [vmem:[#allocation7 + $0x88] sm:$0xff]
        %v843 = vld [vmem:[#allocation7 + $0x90] sm:$0xff]
        %v844 = vld [vmem:[#allocation7 + $0x98] sm:$0xff]
        %v845 = vld [vmem:[#allocation7 + $0xa0] sm:$0xff]
        %v846 = vld [vmem:[#allocation7 + $0xa8] sm:$0xff]
        %v847 = vld [vmem:[#allocation7 + $0xb0] sm:$0xff]
        %v848 = vld [vmem:[#allocation7 + $0xb8] sm:$0xff]
        %v849 = vld [vmem:[#allocation7 + $0xc0] sm:$0xff]
        %v850 = vld [vmem:[#allocation7 + $0xc8] sm:$0xff]
        %v851 = vld [vmem:[#allocation7 + $0xd0] sm:$0xff]
        %v852 = vld [vmem:[#allocation7 + $0xd8] sm:$0xff]
        %v853 = vld [vmem:[#allocation7 + $0xe0] sm:$0xff]
        %v854 = vld [vmem:[#allocation7 + $0xe8] sm:$0xff]
        %v855 = vld [vmem:[#allocation7 + $0xf0] sm:$0xff]
        %v856 = vld [vmem:[#allocation7 + $0xf8] sm:$0xff]
        %v857 = vld [vmem:[#allocation7 + $0x100] sm:$0xff]
        %v858 = vld [vmem:[#allocation7 + $0x108] sm:$0xff]
        %v859 = vld [vmem:[#allocation7 + $0x110] sm:$0xff]
        %v860 = vld [vmem:[#allocation7 + $0x118] sm:$0xff]
        %v861 = vld [vmem:[#allocation7 + $0x120] sm:$0xff]
        %v862 = vld [vmem:[#allocation7 + $0x128] sm:$0xff]
        %v863 = vld [vmem:[#allocation7 + $0x130] sm:$0xff]
        %v864 = vld [vmem:[#allocation7 + $0x138] sm:$0xff]
        %v865 = vld [vmem:[#allocation7 + $0x140] sm:$0xff]
        %v866 = vld [vmem:[#allocation7 + $0x148] sm:$0xff]
        %v867 = vld [vmem:[#allocation7 + $0x150] sm:$0xff]
        %v868 = vld [vmem:[#allocation7 + $0x158] sm:$0xff]
        %v869 = vld [vmem:[#allocation7 + $0x160] sm:$0xff]
        %v870 = vld [vmem:[#allocation7 + $0x168] sm:$0xff]
        %v871 = vld [vmem:[#allocation7 + $0x170] sm:$0xff]
        %v872 = vld [vmem:[#allocation7 + $0x178] sm:$0xff]
        %v873 = vld [vmem:[#allocation7 + $0x180] sm:$0xff]
        %v874 = vld [vmem:[#allocation7 + $0x188] sm:$0xff]
        %v875 = vld [vmem:[#allocation7 + $0x190] sm:$0xff]
        %v876 = vld [vmem:[#allocation7 + $0x198] sm:$0xff]
        %v877 = vld [vmem:[#allocation7 + $0x1a0] sm:$0xff]
        %v878 = vld [vmem:[#allocation7 + $0x1a8] sm:$0xff]
        %v879 = vld [vmem:[#allocation7 + $0x1b0] sm:$0xff]
        %v880 = vld [vmem:[#allocation7 + $0x1b8] sm:$0xff]
        %v881 = vld [vmem:[#allocation7 + $0x1c0] sm:$0xff]
        %v882 = vld [vmem:[#allocation7 + $0x1c8] sm:$0xff]
        %v883 = vld [vmem:[#allocation7 + $0x1d0] sm:$0xff]
        %v884 = vld [vmem:[#allocation7 + $0x1d8] sm:$0xff]
        %v885 = vld [vmem:[#allocation7 + $0x1e0] sm:$0xff]
        %v886 = vld [vmem:[#allocation7 + $0x1e8] sm:$0xff]
        %v887 = vld [vmem:[#allocation7 + $0x1f0] sm:$0xff]
        %v888 = vld [vmem:[#allocation7 + $0x1f8] sm:$0xff]
        %889 = vmatprep.subr.bf16.mxu0 0
        %890 = vmatpush1.bf16.xpose.msra.mxu0 %v800
        %891 = vmatprep.subr.bf16.mxu0 0
        %892 = vmatpush1.bf16.xpose.msra.mxu0 %v799
        %893 = vmatprep.subr.bf16.mxu0 0
        %894 = vmatpush1.bf16.xpose.msra.mxu0 %v798
        %895 = vmatprep.subr.bf16.mxu0 0
        %896 = vmatpush1.bf16.xpose.msra.mxu0 %v797
        %897 = vmatprep.subr.bf16.mxu0 0
        %898 = vmatpush1.bf16.xpose.msra.mxu0 %v796
        %899 = vmatprep.subr.bf16.mxu0 0
        %900 = vmatpush1.bf16.xpose.msra.mxu0 %v795
        %901 = vmatprep.subr.bf16.mxu0 0
        %902 = vmatpush1.bf16.xpose.msra.mxu0 %v794
        %903 = vmatprep.subr.bf16.mxu0 0
        %904 = vmatpush1.bf16.xpose.msra.mxu0 %v793
        %905 = vmatprep.subr.bf16.mxu0 0
        %906 = vmatpush2.bf16.xpose.msra.mxu0 %v808
        %907 = vmatprep.subr.bf16.mxu0 0
        %908 = vmatpush2.bf16.xpose.msra.mxu0 %v807
        %909 = vmatprep.subr.bf16.mxu0 0
        %910 = vmatpush2.bf16.xpose.msra.mxu0 %v806
        %911 = vmatprep.subr.bf16.mxu0 0
        %912 = vmatpush2.bf16.xpose.msra.mxu0 %v805
        %913 = vmatprep.subr.bf16.mxu0 0
        %914 = vmatpush2.bf16.xpose.msra.mxu0 %v804
        %915 = vmatprep.subr.bf16.mxu0 0
        %916 = vmatpush2.bf16.xpose.msra.mxu0 %v803
        %917 = vmatprep.subr.bf16.mxu0 0
        %918 = vmatpush2.bf16.xpose.msra.mxu0 %v802
        %919 = vmatprep.subr.bf16.mxu0 0
        %920 = vmatpush2.bf16.xpose.msra.mxu0 %v801
        %921 = vmatprep.mubr.bf16.mxu0 0
        %922 = vmatmul.mubr.bf16.gmra.mxu0 %v777
        %v923 = vpop.f32.mrf.mxu0
        %v924 = vadd.f32 %v825, %v923
        %v925 = vpop.f32.mrf.mxu0
        %v926 = vadd.f32 %v826, %v925
        %v927 = vpop.f32.mrf.mxu0
        %v928 = vadd.f32 %v827, %v927
        %v929 = vpop.f32.mrf.mxu0
        %v930 = vadd.f32 %v828, %v929
        %931 = vmatprep.mubr.bf16.mxu0 0
        %932 = vmatmul.mubr.bf16.gmra.mxu0 %v778
        %v933 = vpop.f32.mrf.mxu0
        %v934 = vadd.f32 %v829, %v933
        %v935 = vpop.f32.mrf.mxu0
        %v936 = vadd.f32 %v830, %v935
        %v937 = vpop.f32.mrf.mxu0
        %v938 = vadd.f32 %v831, %v937
        %v939 = vpop.f32.mrf.mxu0
        %v940 = vadd.f32 %v832, %v939
        %941 = vmatprep.mubr.bf16.mxu0 0
        %942 = vmatmul.mubr.bf16.gmra.mxu0 %v779
        %v943 = vpop.f32.mrf.mxu0
        %v944 = vadd.f32 %v833, %v943
        %v945 = vpop.f32.mrf.mxu0
        %v946 = vadd.f32 %v834, %v945
        %v947 = vpop.f32.mrf.mxu0
        %v948 = vadd.f32 %v835, %v947
        %v949 = vpop.f32.mrf.mxu0
        %v950 = vadd.f32 %v836, %v949
        %951 = vmatprep.mubr.bf16.mxu0 0
        %952 = vmatmul.mubr.bf16.gmra.mxu0 %v780
        %v953 = vpop.f32.mrf.mxu0
        %v954 = vadd.f32 %v837, %v953
        %v955 = vpop.f32.mrf.mxu0
        %v956 = vadd.f32 %v838, %v955
        %v957 = vpop.f32.mrf.mxu0
        %v958 = vadd.f32 %v839, %v957
        %v959 = vpop.f32.mrf.mxu0
        %v960 = vadd.f32 %v840, %v959
        %961 = vmatprep.mubr.bf16.mxu0 0
        %962 = vmatmul.mubr.bf16.gmra.mxu0 %v781
        %v963 = vpop.f32.mrf.mxu0
        %v964 = vadd.f32 %v841, %v963
        %v965 = vpop.f32.mrf.mxu0
        %v966 = vadd.f32 %v842, %v965
        %v967 = vpop.f32.mrf.mxu0
        %v968 = vadd.f32 %v843, %v967
        %v969 = vpop.f32.mrf.mxu0
        %v970 = vadd.f32 %v844, %v969
        %971 = vmatprep.mubr.bf16.mxu0 0
        %972 = vmatmul.mubr.bf16.gmra.mxu0 %v782
        %v973 = vpop.f32.mrf.mxu0
        %v974 = vadd.f32 %v845, %v973
        %v975 = vpop.f32.mrf.mxu0
        %v976 = vadd.f32 %v846, %v975
        %v977 = vpop.f32.mrf.mxu0
        %v978 = vadd.f32 %v847, %v977
        %v979 = vpop.f32.mrf.mxu0
        %v980 = vadd.f32 %v848, %v979
        %981 = vmatprep.mubr.bf16.mxu0 0
        %982 = vmatmul.mubr.bf16.gmra.mxu0 %v783
        %v983 = vpop.f32.mrf.mxu0
        %v984 = vadd.f32 %v849, %v983
        %v985 = vpop.f32.mrf.mxu0
        %v986 = vadd.f32 %v850, %v985
        %v987 = vpop.f32.mrf.mxu0
        %v988 = vadd.f32 %v851, %v987
        %v989 = vpop.f32.mrf.mxu0
        %v990 = vadd.f32 %v852, %v989
        %991 = vmatprep.mubr.bf16.mxu0 0
        %992 = vmatmul.mubr.bf16.gmra.mxu0 %v784
        %v993 = vpop.f32.mrf.mxu0
        %v994 = vadd.f32 %v853, %v993
        %v995 = vpop.f32.mrf.mxu0
        %v996 = vadd.f32 %v854, %v995
        %v997 = vpop.f32.mrf.mxu0
        %v998 = vadd.f32 %v855, %v997
        %v999 = vpop.f32.mrf.mxu0
        %v1000 = vadd.f32 %v856, %v999
        %1001 = vmatprep.mubr.bf16.mxu0 0
        %1002 = vmatmul.mubr.bf16.gmra.mxu0 %v785
        %v1003 = vpop.f32.mrf.mxu0
        %v1004 = vadd.f32 %v857, %v1003
        %v1005 = vpop.f32.mrf.mxu0
        %v1006 = vadd.f32 %v858, %v1005
        %v1007 = vpop.f32.mrf.mxu0
        %v1008 = vadd.f32 %v859, %v1007
        %v1009 = vpop.f32.mrf.mxu0
        %v1010 = vadd.f32 %v860, %v1009
        %1011 = vmatprep.mubr.bf16.mxu0 0
        %1012 = vmatmul.mubr.bf16.gmra.mxu0 %v786
        %v1013 = vpop.f32.mrf.mxu0
        %v1014 = vadd.f32 %v861, %v1013
        %v1015 = vpop.f32.mrf.mxu0
        %v1016 = vadd.f32 %v862, %v1015
        %v1017 = vpop.f32.mrf.mxu0
        %v1018 = vadd.f32 %v863, %v1017
        %v1019 = vpop.f32.mrf.mxu0
        %v1020 = vadd.f32 %v864, %v1019
        %1021 = vmatprep.mubr.bf16.mxu0 0
        %1022 = vmatmul.mubr.bf16.gmra.mxu0 %v787
        %v1023 = vpop.f32.mrf.mxu0
        %v1024 = vadd.f32 %v865, %v1023
        %v1025 = vpop.f32.mrf.mxu0
        %v1026 = vadd.f32 %v866, %v1025
        %v1027 = vpop.f32.mrf.mxu0
        %v1028 = vadd.f32 %v867, %v1027
        %v1029 = vpop.f32.mrf.mxu0
        %v1030 = vadd.f32 %v868, %v1029
        %1031 = vmatprep.mubr.bf16.mxu0 0
        %1032 = vmatmul.mubr.bf16.gmra.mxu0 %v788
        %v1033 = vpop.f32.mrf.mxu0
        %v1034 = vadd.f32 %v869, %v1033
        %v1035 = vpop.f32.mrf.mxu0
        %v1036 = vadd.f32 %v870, %v1035
        %v1037 = vpop.f32.mrf.mxu0
        %v1038 = vadd.f32 %v871, %v1037
        %v1039 = vpop.f32.mrf.mxu0
        %v1040 = vadd.f32 %v872, %v1039
        %1041 = vmatprep.mubr.bf16.mxu0 0
        %1042 = vmatmul.mubr.bf16.gmra.mxu0 %v789
        %v1043 = vpop.f32.mrf.mxu0
        %v1044 = vadd.f32 %v873, %v1043
        %v1045 = vpop.f32.mrf.mxu0
        %v1046 = vadd.f32 %v874, %v1045
        %v1047 = vpop.f32.mrf.mxu0
        %v1048 = vadd.f32 %v875, %v1047
        %v1049 = vpop.f32.mrf.mxu0
        %v1050 = vadd.f32 %v876, %v1049
        %1051 = vmatprep.mubr.bf16.mxu0 0
        %1052 = vmatmul.mubr.bf16.gmra.mxu0 %v790
        %v1053 = vpop.f32.mrf.mxu0
        %v1054 = vadd.f32 %v877, %v1053
        %v1055 = vpop.f32.mrf.mxu0
        %v1056 = vadd.f32 %v878, %v1055
        %v1057 = vpop.f32.mrf.mxu0
        %v1058 = vadd.f32 %v879, %v1057
        %v1059 = vpop.f32.mrf.mxu0
        %v1060 = vadd.f32 %v880, %v1059
        %1061 = vmatprep.mubr.bf16.mxu0 0
        %1062 = vmatmul.mubr.bf16.gmra.mxu0 %v791
        %v1063 = vpop.f32.mrf.mxu0
        %v1064 = vadd.f32 %v881, %v1063
        %v1065 = vpop.f32.mrf.mxu0
        %v1066 = vadd.f32 %v882, %v1065
        %v1067 = vpop.f32.mrf.mxu0
        %v1068 = vadd.f32 %v883, %v1067
        %v1069 = vpop.f32.mrf.mxu0
        %v1070 = vadd.f32 %v884, %v1069
        %1071 = vmatprep.mubr.bf16.mxu0 0
        %1072 = vmatmul.mubr.bf16.gmra.mxu0 %v792
        %v1073 = vpop.f32.mrf.mxu0
        %v1074 = vadd.f32 %v885, %v1073
        %v1075 = vpop.f32.mrf.mxu0
        %v1076 = vadd.f32 %v886, %v1075
        %v1077 = vpop.f32.mrf.mxu0
        %v1078 = vadd.f32 %v887, %v1077
        %v1079 = vpop.f32.mrf.mxu0
        %v1080 = vadd.f32 %v888, %v1079
        %1081 = vdwg.mxu0
        %v1082 = vmax.f32 %v924, %v926
        %1083 = vmax.xlane.f32.xlu0 %v1082
        %v1084 = vpop.xlane.xlu0 %1083
        %v1085 = vmax.f32 %v928, %v930
        %1086 = vmax.xlane.f32.xlu0 %v1085
        %v1087 = vpop.xlane.xlu0 %1086
        %v1088 = vmax.f32 %v934, %v936
        %1089 = vmax.xlane.f32.xlu0 %v1088
        %v1090 = vpop.xlane.xlu0 %1089
        %v1091 = vmax.f32 %v938, %v940
        %1092 = vmax.xlane.f32.xlu0 %v1091
        %v1093 = vpop.xlane.xlu0 %1092
        %v1094 = vmax.f32 %v944, %v946
        %1095 = vmax.xlane.f32.xlu0 %v1094
        %v1096 = vpop.xlane.xlu0 %1095
        %v1097 = vmax.f32 %v948, %v950
        %1098 = vmax.xlane.f32.xlu0 %v1097
        %v1099 = vpop.xlane.xlu0 %1098
        %v1100 = vmax.f32 %v954, %v956
        %1101 = vmax.xlane.f32.xlu0 %v1100
        %v1102 = vpop.xlane.xlu0 %1101
        %v1103 = vmax.f32 %v958, %v960
        %1104 = vmax.xlane.f32.xlu0 %v1103
        %v1105 = vpop.xlane.xlu0 %1104
        %v1106 = vmax.f32 %v964, %v966
        %1107 = vmax.xlane.f32.xlu0 %v1106
        %v1108 = vpop.xlane.xlu0 %1107
        %v1109 = vmax.f32 %v968, %v970
        %1110 = vmax.xlane.f32.xlu0 %v1109
        %v1111 = vpop.xlane.xlu0 %1110
        %v1112 = vmax.f32 %v974, %v976
        %1113 = vmax.xlane.f32.xlu0 %v1112
        %v1114 = vpop.xlane.xlu0 %1113
        %v1115 = vmax.f32 %v978, %v980
        %1116 = vmax.xlane.f32.xlu0 %v1115
        %v1117 = vpop.xlane.xlu0 %1116
        %v1118 = vmax.f32 %v984, %v986
        %1119 = vmax.xlane.f32.xlu0 %v1118
        %v1120 = vpop.xlane.xlu0 %1119
        %v1121 = vmax.f32 %v988, %v990
        %1122 = vmax.xlane.f32.xlu0 %v1121
        %v1123 = vpop.xlane.xlu0 %1122
        %v1124 = vmax.f32 %v994, %v996
        %1125 = vmax.xlane.f32.xlu0 %v1124
        %v1126 = vpop.xlane.xlu0 %1125
        %v1127 = vmax.f32 %v998, %v1000
        %1128 = vmax.xlane.f32.xlu0 %v1127
        %v1129 = vpop.xlane.xlu0 %1128
        %v1130 = vmax.f32 %v1004, %v1006
        %1131 = vmax.xlane.f32.xlu0 %v1130
        %v1132 = vpop.xlane.xlu0 %1131
        %v1133 = vmax.f32 %v1008, %v1010
        %1134 = vmax.xlane.f32.xlu0 %v1133
        %v1135 = vpop.xlane.xlu0 %1134
        %v1136 = vmax.f32 %v1014, %v1016
        %1137 = vmax.xlane.f32.xlu0 %v1136
        %v1138 = vpop.xlane.xlu0 %1137
        %v1139 = vmax.f32 %v1018, %v1020
        %1140 = vmax.xlane.f32.xlu0 %v1139
        %v1141 = vpop.xlane.xlu0 %1140
        %v1142 = vmax.f32 %v1024, %v1026
        %1143 = vmax.xlane.f32.xlu0 %v1142
        %v1144 = vpop.xlane.xlu0 %1143
        %v1145 = vmax.f32 %v1028, %v1030
        %1146 = vmax.xlane.f32.xlu0 %v1145
        %v1147 = vpop.xlane.xlu0 %1146
        %v1148 = vmax.f32 %v1034, %v1036
        %1149 = vmax.xlane.f32.xlu0 %v1148
        %v1150 = vpop.xlane.xlu0 %1149
        %v1151 = vmax.f32 %v1038, %v1040
        %1152 = vmax.xlane.f32.xlu0 %v1151
        %v1153 = vpop.xlane.xlu0 %1152
        %v1154 = vmax.f32 %v1044, %v1046
        %1155 = vmax.xlane.f32.xlu0 %v1154
        %v1156 = vpop.xlane.xlu0 %1155
        %v1157 = vmax.f32 %v1048, %v1050
        %1158 = vmax.xlane.f32.xlu0 %v1157
        %v1159 = vpop.xlane.xlu0 %1158
        %v1160 = vmax.f32 %v1054, %v1056
        %1161 = vmax.xlane.f32.xlu0 %v1160
        %v1162 = vpop.xlane.xlu0 %1161
        %v1163 = vmax.f32 %v1058, %v1060
        %1164 = vmax.xlane.f32.xlu0 %v1163
        %v1165 = vpop.xlane.xlu0 %1164
        %v1166 = vmax.f32 %v1064, %v1066
        %1167 = vmax.xlane.f32.xlu0 %v1166
        %v1168 = vpop.xlane.xlu0 %1167
        %v1169 = vmax.f32 %v1068, %v1070
        %1170 = vmax.xlane.f32.xlu0 %v1169
        %v1171 = vpop.xlane.xlu0 %1170
        %v1172 = vmax.f32 %v1074, %v1076
        %1173 = vmax.xlane.f32.xlu0 %v1172
        %v1174 = vpop.xlane.xlu0 %1173
        %v1175 = vmax.f32 %v1078, %v1080
        %1176 = vmax.xlane.f32.xlu0 %v1175
        %v1177 = vpop.xlane.xlu0 %1176
        %v1178 = vsub.f32 %v924, %v1084
        %v1179 = vsub.f32 %v926, %v1084
        %v1180 = vsub.f32 %v928, %v1087
        %v1181 = vsub.f32 %v930, %v1087
        %v1182 = vsub.f32 %v934, %v1090
        %v1183 = vsub.f32 %v936, %v1090
        %v1184 = vsub.f32 %v938, %v1093
        %v1185 = vsub.f32 %v940, %v1093
        %v1186 = vsub.f32 %v944, %v1096
        %v1187 = vsub.f32 %v946, %v1096
        %v1188 = vsub.f32 %v948, %v1099
        %v1189 = vsub.f32 %v950, %v1099
        %v1190 = vsub.f32 %v954, %v1102
        %v1191 = vsub.f32 %v956, %v1102
        %v1192 = vsub.f32 %v958, %v1105
        %v1193 = vsub.f32 %v960, %v1105
        %v1194 = vsub.f32 %v964, %v1108
        %v1195 = vsub.f32 %v966, %v1108
        %v1196 = vsub.f32 %v968, %v1111
        %v1197 = vsub.f32 %v970, %v1111
        %v1198 = vsub.f32 %v974, %v1114
        %v1199 = vsub.f32 %v976, %v1114
        %v1200 = vsub.f32 %v978, %v1117
        %v1201 = vsub.f32 %v980, %v1117
        %v1202 = vsub.f32 %v984, %v1120
        %v1203 = vsub.f32 %v986, %v1120
        %v1204 = vsub.f32 %v988, %v1123
        %v1205 = vsub.f32 %v990, %v1123
        %v1206 = vsub.f32 %v994, %v1126
        %v1207 = vsub.f32 %v996, %v1126
        %v1208 = vsub.f32 %v998, %v1129
        %v1209 = vsub.f32 %v1000, %v1129
        %v1210 = vsub.f32 %v1004, %v1132
        %v1211 = vsub.f32 %v1006, %v1132
        %v1212 = vsub.f32 %v1008, %v1135
        %v1213 = vsub.f32 %v1010, %v1135
        %v1214 = vsub.f32 %v1014, %v1138
        %v1215 = vsub.f32 %v1016, %v1138
        %v1216 = vsub.f32 %v1018, %v1141
        %v1217 = vsub.f32 %v1020, %v1141
        %v1218 = vsub.f32 %v1024, %v1144
        %v1219 = vsub.f32 %v1026, %v1144
        %v1220 = vsub.f32 %v1028, %v1147
        %v1221 = vsub.f32 %v1030, %v1147
        %v1222 = vsub.f32 %v1034, %v1150
        %v1223 = vsub.f32 %v1036, %v1150
        %v1224 = vsub.f32 %v1038, %v1153
        %v1225 = vsub.f32 %v1040, %v1153
        %v1226 = vsub.f32 %v1044, %v1156
        %v1227 = vsub.f32 %v1046, %v1156
        %v1228 = vsub.f32 %v1048, %v1159
        %v1229 = vsub.f32 %v1050, %v1159
        %v1230 = vsub.f32 %v1054, %v1162
        %v1231 = vsub.f32 %v1056, %v1162
        %v1232 = vsub.f32 %v1058, %v1165
        %v1233 = vsub.f32 %v1060, %v1165
        %v1234 = vsub.f32 %v1064, %v1168
        %v1235 = vsub.f32 %v1066, %v1168
        %v1236 = vsub.f32 %v1068, %v1171
        %v1237 = vsub.f32 %v1070, %v1171
        %v1238 = vsub.f32 %v1074, %v1174
        %v1239 = vsub.f32 %v1076, %v1174
        %v1240 = vsub.f32 %v1078, %v1177
        %v1241 = vsub.f32 %v1080, %v1177
        %v1242 = vmul.f32 %v1178, 1.442695
        %v1243 = vpow.pop %v1242
        %v1244 = vmul.f32 %v1179, 1.442695
        %v1245 = vpow.pop %v1244
        %v1246 = vmul.f32 %v1180, 1.442695
        %v1247 = vpow.pop %v1246
        %v1248 = vmul.f32 %v1181, 1.442695
        %v1249 = vpow.pop %v1248
        %v1250 = vmul.f32 %v1182, 1.442695
        %v1251 = vpow.pop %v1250
        %v1252 = vmul.f32 %v1183, 1.442695
        %v1253 = vpow.pop %v1252
        %v1254 = vmul.f32 %v1184, 1.442695
        %v1255 = vpow.pop %v1254
        %v1256 = vmul.f32 %v1185, 1.442695
        %v1257 = vpow.pop %v1256
        %v1258 = vmul.f32 %v1186, 1.442695
        %v1259 = vpow.pop %v1258
        %v1260 = vmul.f32 %v1187, 1.442695
        %v1261 = vpow.pop %v1260
        %v1262 = vmul.f32 %v1188, 1.442695
        %v1263 = vpow.pop %v1262
        %v1264 = vmul.f32 %v1189, 1.442695
        %v1265 = vpow.pop %v1264
        %v1266 = vmul.f32 %v1190, 1.442695
        %v1267 = vpow.pop %v1266
        %v1268 = vmul.f32 %v1191, 1.442695
        %v1269 = vpow.pop %v1268
        %v1270 = vmul.f32 %v1192, 1.442695
        %v1271 = vpow.pop %v1270
        %v1272 = vmul.f32 %v1193, 1.442695
        %v1273 = vpow.pop %v1272
        %v1274 = vmul.f32 %v1194, 1.442695
        %v1275 = vpow.pop %v1274
        %v1276 = vmul.f32 %v1195, 1.442695
        %v1277 = vpow.pop %v1276
        %v1278 = vmul.f32 %v1196, 1.442695
        %v1279 = vpow.pop %v1278
        %v1280 = vmul.f32 %v1197, 1.442695
        %v1281 = vpow.pop %v1280
        %v1282 = vmul.f32 %v1198, 1.442695
        %v1283 = vpow.pop %v1282
        %v1284 = vmul.f32 %v1199, 1.442695
        %v1285 = vpow.pop %v1284
        %v1286 = vmul.f32 %v1200, 1.442695
        %v1287 = vpow.pop %v1286
        %v1288 = vmul.f32 %v1201, 1.442695
        %v1289 = vpow.pop %v1288
        %v1290 = vmul.f32 %v1202, 1.442695
        %v1291 = vpow.pop %v1290
        %v1292 = vmul.f32 %v1203, 1.442695
        %v1293 = vpow.pop %v1292
        %v1294 = vmul.f32 %v1204, 1.442695
        %v1295 = vpow.pop %v1294
        %v1296 = vmul.f32 %v1205, 1.442695
        %v1297 = vpow.pop %v1296
        %v1298 = vmul.f32 %v1206, 1.442695
        %v1299 = vpow.pop %v1298
        %v1300 = vmul.f32 %v1207, 1.442695
        %v1301 = vpow.pop %v1300
        %v1302 = vmul.f32 %v1208, 1.442695
        %v1303 = vpow.pop %v1302
        %v1304 = vmul.f32 %v1209, 1.442695
        %v1305 = vpow.pop %v1304
        %v1306 = vmul.f32 %v1210, 1.442695
        %v1307 = vpow.pop %v1306
        %v1308 = vmul.f32 %v1211, 1.442695
        %v1309 = vpow.pop %v1308
        %v1310 = vmul.f32 %v1212, 1.442695
        %v1311 = vpow.pop %v1310
        %v1312 = vmul.f32 %v1213, 1.442695
        %v1313 = vpow.pop %v1312
        %v1314 = vmul.f32 %v1214, 1.442695
        %v1315 = vpow.pop %v1314
        %v1316 = vmul.f32 %v1215, 1.442695
        %v1317 = vpow.pop %v1316
        %v1318 = vmul.f32 %v1216, 1.442695
        %v1319 = vpow.pop %v1318
        %v1320 = vmul.f32 %v1217, 1.442695
        %v1321 = vpow.pop %v1320
        %v1322 = vmul.f32 %v1218, 1.442695
        %v1323 = vpow.pop %v1322
        %v1324 = vmul.f32 %v1219, 1.442695
        %v1325 = vpow.pop %v1324
        %v1326 = vmul.f32 %v1220, 1.442695
        %v1327 = vpow.pop %v1326
        %v1328 = vmul.f32 %v1221, 1.442695
        %v1329 = vpow.pop %v1328
        %v1330 = vmul.f32 %v1222, 1.442695
        %v1331 = vpow.pop %v1330
        %v1332 = vmul.f32 %v1223, 1.442695
        %v1333 = vpow.pop %v1332
        %v1334 = vmul.f32 %v1224, 1.442695
        %v1335 = vpow.pop %v1334
        %v1336 = vmul.f32 %v1225, 1.442695
        %v1337 = vpow.pop %v1336
        %v1338 = vmul.f32 %v1226, 1.442695
        %v1339 = vpow.pop %v1338
        %v1340 = vmul.f32 %v1227, 1.442695
        %v1341 = vpow.pop %v1340
        %v1342 = vmul.f32 %v1228, 1.442695
        %v1343 = vpow.pop %v1342
        %v1344 = vmul.f32 %v1229, 1.442695
        %v1345 = vpow.pop %v1344
        %v1346 = vmul.f32 %v1230, 1.442695
        %v1347 = vpow.pop %v1346
        %v1348 = vmul.f32 %v1231, 1.442695
        %v1349 = vpow.pop %v1348
        %v1350 = vmul.f32 %v1232, 1.442695
        %v1351 = vpow.pop %v1350
        %v1352 = vmul.f32 %v1233, 1.442695
        %v1353 = vpow.pop %v1352
        %v1354 = vmul.f32 %v1234, 1.442695
        %v1355 = vpow.pop %v1354
        %v1356 = vmul.f32 %v1235, 1.442695
        %v1357 = vpow.pop %v1356
        %v1358 = vmul.f32 %v1236, 1.442695
        %v1359 = vpow.pop %v1358
        %v1360 = vmul.f32 %v1237, 1.442695
        %v1361 = vpow.pop %v1360
        %v1362 = vmul.f32 %v1238, 1.442695
        %v1363 = vpow.pop %v1362
        %v1364 = vmul.f32 %v1239, 1.442695
        %v1365 = vpow.pop %v1364
        %v1366 = vmul.f32 %v1240, 1.442695
        %v1367 = vpow.pop %v1366
        %v1368 = vmul.f32 %v1241, 1.442695
        %v1369 = vpow.pop %v1368
        %v1370 = vadd.f32 %v1243, %v1245
        %1371 = vadd.xlane.f32.xlu0 %v1370
        %v1372 = vpop.xlane.xlu0 %1371
        %v1373 = vadd.f32 %v1247, %v1249
        %1374 = vadd.xlane.f32.xlu0 %v1373
        %v1375 = vpop.xlane.xlu0 %1374
        %v1376 = vadd.f32 %v1251, %v1253
        %1377 = vadd.xlane.f32.xlu0 %v1376
        %v1378 = vpop.xlane.xlu0 %1377
        %v1379 = vadd.f32 %v1255, %v1257
        %1380 = vadd.xlane.f32.xlu0 %v1379
        %v1381 = vpop.xlane.xlu0 %1380
        %v1382 = vadd.f32 %v1259, %v1261
        %1383 = vadd.xlane.f32.xlu0 %v1382
        %v1384 = vpop.xlane.xlu0 %1383
        %v1385 = vadd.f32 %v1263, %v1265
        %1386 = vadd.xlane.f32.xlu0 %v1385
        %v1387 = vpop.xlane.xlu0 %1386
        %v1388 = vadd.f32 %v1267, %v1269
        %1389 = vadd.xlane.f32.xlu0 %v1388
        %v1390 = vpop.xlane.xlu0 %1389
        %v1391 = vadd.f32 %v1271, %v1273
        %1392 = vadd.xlane.f32.xlu0 %v1391
        %v1393 = vpop.xlane.xlu0 %1392
        %v1394 = vadd.f32 %v1275, %v1277
        %1395 = vadd.xlane.f32.xlu0 %v1394
        %v1396 = vpop.xlane.xlu0 %1395
        %v1397 = vadd.f32 %v1279, %v1281
        %1398 = vadd.xlane.f32.xlu0 %v1397
        %v1399 = vpop.xlane.xlu0 %1398
        %v1400 = vadd.f32 %v1283, %v1285
        %1401 = vadd.xlane.f32.xlu0 %v1400
        %v1402 = vpop.xlane.xlu0 %1401
        %v1403 = vadd.f32 %v1287, %v1289
        %1404 = vadd.xlane.f32.xlu0 %v1403
        %v1405 = vpop.xlane.xlu0 %1404
        %v1406 = vadd.f32 %v1291, %v1293
        %1407 = vadd.xlane.f32.xlu0 %v1406
        %v1408 = vpop.xlane.xlu0 %1407
        %v1409 = vadd.f32 %v1295, %v1297
        %1410 = vadd.xlane.f32.xlu0 %v1409
        %v1411 = vpop.xlane.xlu0 %1410
        %v1412 = vadd.f32 %v1299, %v1301
        %1413 = vadd.xlane.f32.xlu0 %v1412
        %v1414 = vpop.xlane.xlu0 %1413
        %v1415 = vadd.f32 %v1303, %v1305
        %1416 = vadd.xlane.f32.xlu0 %v1415
        %v1417 = vpop.xlane.xlu0 %1416
        %v1418 = vadd.f32 %v1307, %v1309
        %1419 = vadd.xlane.f32.xlu0 %v1418
        %v1420 = vpop.xlane.xlu0 %1419
        %v1421 = vadd.f32 %v1311, %v1313
        %1422 = vadd.xlane.f32.xlu0 %v1421
        %v1423 = vpop.xlane.xlu0 %1422
        %v1424 = vadd.f32 %v1315, %v1317
        %1425 = vadd.xlane.f32.xlu0 %v1424
        %v1426 = vpop.xlane.xlu0 %1425
        %v1427 = vadd.f32 %v1319, %v1321
        %1428 = vadd.xlane.f32.xlu0 %v1427
        %v1429 = vpop.xlane.xlu0 %1428
        %v1430 = vadd.f32 %v1323, %v1325
        %1431 = vadd.xlane.f32.xlu0 %v1430
        %v1432 = vpop.xlane.xlu0 %1431
        %v1433 = vadd.f32 %v1327, %v1329
        %1434 = vadd.xlane.f32.xlu0 %v1433
        %v1435 = vpop.xlane.xlu0 %1434
        %v1436 = vadd.f32 %v1331, %v1333
        %1437 = vadd.xlane.f32.xlu0 %v1436
        %v1438 = vpop.xlane.xlu0 %1437
        %v1439 = vadd.f32 %v1335, %v1337
        %1440 = vadd.xlane.f32.xlu0 %v1439
        %v1441 = vpop.xlane.xlu0 %1440
        %v1442 = vadd.f32 %v1339, %v1341
        %1443 = vadd.xlane.f32.xlu0 %v1442
        %v1444 = vpop.xlane.xlu0 %1443
        %v1445 = vadd.f32 %v1343, %v1345
        %1446 = vadd.xlane.f32.xlu0 %v1445
        %v1447 = vpop.xlane.xlu0 %1446
        %v1448 = vadd.f32 %v1347, %v1349
        %1449 = vadd.xlane.f32.xlu0 %v1448
        %v1450 = vpop.xlane.xlu0 %1449
        %v1451 = vadd.f32 %v1351, %v1353
        %1452 = vadd.xlane.f32.xlu0 %v1451
        %v1453 = vpop.xlane.xlu0 %1452
        %v1454 = vadd.f32 %v1355, %v1357
        %1455 = vadd.xlane.f32.xlu0 %v1454
        %v1456 = vpop.xlane.xlu0 %1455
        %v1457 = vadd.f32 %v1359, %v1361
        %1458 = vadd.xlane.f32.xlu0 %v1457
        %v1459 = vpop.xlane.xlu0 %1458
        %v1460 = vadd.f32 %v1363, %v1365
        %1461 = vadd.xlane.f32.xlu0 %v1460
        %v1462 = vpop.xlane.xlu0 %1461
        %v1463 = vadd.f32 %v1367, %v1369
        %1464 = vadd.xlane.f32.xlu0 %v1463
        %v1465 = vpop.xlane.xlu0 %1464
        %v1466 = vrcp.pop %v1372
        %v1467 = vrcp.pop %v1375
        %v1468 = vrcp.pop %v1378
        %v1469 = vrcp.pop %v1381
        %v1470 = vrcp.pop %v1384
        %v1471 = vrcp.pop %v1387
        %v1472 = vrcp.pop %v1390
        %v1473 = vrcp.pop %v1393
        %v1474 = vrcp.pop %v1396
        %v1475 = vrcp.pop %v1399
        %v1476 = vrcp.pop %v1402
        %v1477 = vrcp.pop %v1405
        %v1478 = vrcp.pop %v1408
        %v1479 = vrcp.pop %v1411
        %v1480 = vrcp.pop %v1414
        %v1481 = vrcp.pop %v1417
        %v1482 = vrcp.pop %v1420
        %v1483 = vrcp.pop %v1423
        %v1484 = vrcp.pop %v1426
        %v1485 = vrcp.pop %v1429
        %v1486 = vrcp.pop %v1432
        %v1487 = vrcp.pop %v1435
        %v1488 = vrcp.pop %v1438
        %v1489 = vrcp.pop %v1441
        %v1490 = vrcp.pop %v1444
        %v1491 = vrcp.pop %v1447
        %v1492 = vrcp.pop %v1450
        %v1493 = vrcp.pop %v1453
        %v1494 = vrcp.pop %v1456
        %v1495 = vrcp.pop %v1459
        %v1496 = vrcp.pop %v1462
        %v1497 = vrcp.pop %v1465
        %v1498 = vmul.f32 %v1243, %v1466
        %v1499 = vmul.f32 %v1245, %v1466
        %v1500 = vmul.f32 %v1247, %v1467
        %v1501 = vmul.f32 %v1249, %v1467
        %v1502 = vmul.f32 %v1251, %v1468
        %v1503 = vmul.f32 %v1253, %v1468
        %v1504 = vmul.f32 %v1255, %v1469
        %v1505 = vmul.f32 %v1257, %v1469
        %v1506 = vmul.f32 %v1259, %v1470
        %v1507 = vmul.f32 %v1261, %v1470
        %v1508 = vmul.f32 %v1263, %v1471
        %v1509 = vmul.f32 %v1265, %v1471
        %v1510 = vmul.f32 %v1267, %v1472
        %v1511 = vmul.f32 %v1269, %v1472
        %v1512 = vmul.f32 %v1271, %v1473
        %v1513 = vmul.f32 %v1273, %v1473
        %v1514 = vmul.f32 %v1275, %v1474
        %v1515 = vmul.f32 %v1277, %v1474
        %v1516 = vmul.f32 %v1279, %v1475
        %v1517 = vmul.f32 %v1281, %v1475
        %v1518 = vmul.f32 %v1283, %v1476
        %v1519 = vmul.f32 %v1285, %v1476
        %v1520 = vmul.f32 %v1287, %v1477
        %v1521 = vmul.f32 %v1289, %v1477
        %v1522 = vmul.f32 %v1291, %v1478
        %v1523 = vmul.f32 %v1293, %v1478
        %v1524 = vmul.f32 %v1295, %v1479
        %v1525 = vmul.f32 %v1297, %v1479
        %v1526 = vmul.f32 %v1299, %v1480
        %v1527 = vmul.f32 %v1301, %v1480
        %v1528 = vmul.f32 %v1303, %v1481
        %v1529 = vmul.f32 %v1305, %v1481
        %v1530 = vmul.f32 %v1307, %v1482
        %v1531 = vmul.f32 %v1309, %v1482
        %v1532 = vmul.f32 %v1311, %v1483
        %v1533 = vmul.f32 %v1313, %v1483
        %v1534 = vmul.f32 %v1315, %v1484
        %v1535 = vmul.f32 %v1317, %v1484
        %v1536 = vmul.f32 %v1319, %v1485
        %v1537 = vmul.f32 %v1321, %v1485
        %v1538 = vmul.f32 %v1323, %v1486
        %v1539 = vmul.f32 %v1325, %v1486
        %v1540 = vmul.f32 %v1327, %v1487
        %v1541 = vmul.f32 %v1329, %v1487
        %v1542 = vmul.f32 %v1331, %v1488
        %v1543 = vmul.f32 %v1333, %v1488
        %v1544 = vmul.f32 %v1335, %v1489
        %v1545 = vmul.f32 %v1337, %v1489
        %v1546 = vmul.f32 %v1339, %v1490
        %v1547 = vmul.f32 %v1341, %v1490
        %v1548 = vmul.f32 %v1343, %v1491
        %v1549 = vmul.f32 %v1345, %v1491
        %v1550 = vmul.f32 %v1347, %v1492
        %v1551 = vmul.f32 %v1349, %v1492
        %v1552 = vmul.f32 %v1351, %v1493
        %v1553 = vmul.f32 %v1353, %v1493
        %v1554 = vmul.f32 %v1355, %v1494
        %v1555 = vmul.f32 %v1357, %v1494
        %v1556 = vmul.f32 %v1359, %v1495
        %v1557 = vmul.f32 %v1361, %v1495
        %v1558 = vmul.f32 %v1363, %v1496
        %v1559 = vmul.f32 %v1365, %v1496
        %v1560 = vmul.f32 %v1367, %v1497
        %v1561 = vmul.f32 %v1369, %v1497
        %v1562 = vpack.c.bf16 %v1500, %v1498
        %v1563 = vpack.c.bf16 %v1501, %v1499
        %v1564 = vpack.c.bf16 %v1504, %v1502
        %v1565 = vpack.c.bf16 %v1505, %v1503
        %v1566 = vpack.c.bf16 %v1508, %v1506
        %v1567 = vpack.c.bf16 %v1509, %v1507
        %v1568 = vpack.c.bf16 %v1512, %v1510
        %v1569 = vpack.c.bf16 %v1513, %v1511
        %v1570 = vpack.c.bf16 %v1516, %v1514
        %v1571 = vpack.c.bf16 %v1517, %v1515
        %v1572 = vpack.c.bf16 %v1520, %v1518
        %v1573 = vpack.c.bf16 %v1521, %v1519
        %v1574 = vpack.c.bf16 %v1524, %v1522
        %v1575 = vpack.c.bf16 %v1525, %v1523
        %v1576 = vpack.c.bf16 %v1528, %v1526
        %v1577 = vpack.c.bf16 %v1529, %v1527
        %v1578 = vpack.c.bf16 %v1532, %v1530
        %v1579 = vpack.c.bf16 %v1533, %v1531
        %v1580 = vpack.c.bf16 %v1536, %v1534
        %v1581 = vpack.c.bf16 %v1537, %v1535
        %v1582 = vpack.c.bf16 %v1540, %v1538
        %v1583 = vpack.c.bf16 %v1541, %v1539
        %v1584 = vpack.c.bf16 %v1544, %v1542
        %v1585 = vpack.c.bf16 %v1545, %v1543
        %v1586 = vpack.c.bf16 %v1548, %v1546
        %v1587 = vpack.c.bf16 %v1549, %v1547
        %v1588 = vpack.c.bf16 %v1552, %v1550
        %v1589 = vpack.c.bf16 %v1553, %v1551
        %v1590 = vpack.c.bf16 %v1556, %v1554
        %v1591 = vpack.c.bf16 %v1557, %v1555
        %v1592 = vpack.c.bf16 %v1560, %v1558
        %v1593 = vpack.c.bf16 %v1561, %v1559
        %1594 = vmatprep.subr.bf16.mxu0 0
        %1595 = vmatpush1.bf16.msra.mxu0 %v816
        %1596 = vmatprep.subr.bf16.mxu0 0
        %1597 = vmatpush1.bf16.msra.mxu0 %v815
        %1598 = vmatprep.subr.bf16.mxu0 0
        %1599 = vmatpush1.bf16.msra.mxu0 %v814
        %1600 = vmatprep.subr.bf16.mxu0 0
        %1601 = vmatpush1.bf16.msra.mxu0 %v813
        %1602 = vmatprep.subr.bf16.mxu0 0
        %1603 = vmatpush1.bf16.msra.mxu0 %v812
        %1604 = vmatprep.subr.bf16.mxu0 0
        %1605 = vmatpush1.bf16.msra.mxu0 %v811
        %1606 = vmatprep.subr.bf16.mxu0 0
        %1607 = vmatpush1.bf16.msra.mxu0 %v810
        %1608 = vmatprep.subr.bf16.mxu0 0
        %1609 = vmatpush1.bf16.msra.mxu0 %v809
        %1610 = vmatprep.subr.bf16.mxu0 0
        %1611 = vmatpush2.bf16.msra.mxu0 %v824
        %1612 = vmatprep.subr.bf16.mxu0 0
        %1613 = vmatpush2.bf16.msra.mxu0 %v823
        %1614 = vmatprep.subr.bf16.mxu0 0
        %1615 = vmatpush2.bf16.msra.mxu0 %v822
        %1616 = vmatprep.subr.bf16.mxu0 0
        %1617 = vmatpush2.bf16.msra.mxu0 %v821
        %1618 = vmatprep.subr.bf16.mxu0 0
        %1619 = vmatpush2.bf16.msra.mxu0 %v820
        %1620 = vmatprep.subr.bf16.mxu0 0
        %1621 = vmatpush2.bf16.msra.mxu0 %v819
        %1622 = vmatprep.subr.bf16.mxu0 0
        %1623 = vmatpush2.bf16.msra.mxu0 %v818
        %1624 = vmatprep.subr.bf16.mxu0 0
        %1625 = vmatpush2.bf16.msra.mxu0 %v817
        %1626 = vmatprep.mubr.bf16.mxu0 %v1563
        %1627 = vmatmul.mubr.bf16.gmra.mxu0 %v1562
        %v1628 = vpop.f32.mrf.mxu0
        %v1629 = vadd.f32 0.0, %v1628
        %v1630 = vpop.f32.mrf.mxu0
        %v1631 = vpop.f32.mrf.mxu0
        %v1632 = vadd.f32 0.0, %v1631
        %v1633 = vpop.f32.mrf.mxu0
        %1634 = vmatprep.mubr.bf16.mxu0 %v1565
        %1635 = vmatmul.mubr.bf16.gmra.mxu0 %v1564
        %v1636 = vpop.f32.mrf.mxu0
        %v1637 = vadd.f32 0.0, %v1636
        %v1638 = vpop.f32.mrf.mxu0
        %v1639 = vpop.f32.mrf.mxu0
        %v1640 = vadd.f32 0.0, %v1639
        %v1641 = vpop.f32.mrf.mxu0
        %1642 = vmatprep.mubr.bf16.mxu0 %v1567
        %1643 = vmatmul.mubr.bf16.gmra.mxu0 %v1566
        %v1644 = vpop.f32.mrf.mxu0
        %v1645 = vadd.f32 0.0, %v1644
        %v1646 = vpop.f32.mrf.mxu0
        %v1647 = vpop.f32.mrf.mxu0
        %v1648 = vadd.f32 0.0, %v1647
        %v1649 = vpop.f32.mrf.mxu0
        %1650 = vmatprep.mubr.bf16.mxu0 %v1569
        %1651 = vmatmul.mubr.bf16.gmra.mxu0 %v1568
        %v1652 = vpop.f32.mrf.mxu0
        %v1653 = vadd.f32 0.0, %v1652
        %v1654 = vpop.f32.mrf.mxu0
        %v1655 = vpop.f32.mrf.mxu0
        %v1656 = vadd.f32 0.0, %v1655
        %v1657 = vpop.f32.mrf.mxu0
        %1658 = vmatprep.mubr.bf16.mxu0 %v1571
        %1659 = vmatmul.mubr.bf16.gmra.mxu0 %v1570
        %v1660 = vpop.f32.mrf.mxu0
        %v1661 = vadd.f32 0.0, %v1660
        %v1662 = vpop.f32.mrf.mxu0
        %v1663 = vpop.f32.mrf.mxu0
        %v1664 = vadd.f32 0.0, %v1663
        %v1665 = vpop.f32.mrf.mxu0
        %1666 = vmatprep.mubr.bf16.mxu0 %v1573
        %1667 = vmatmul.mubr.bf16.gmra.mxu0 %v1572
        %v1668 = vpop.f32.mrf.mxu0
        %v1669 = vadd.f32 0.0, %v1668
        %v1670 = vpop.f32.mrf.mxu0
        %v1671 = vpop.f32.mrf.mxu0
        %v1672 = vadd.f32 0.0, %v1671
        %v1673 = vpop.f32.mrf.mxu0
        %1674 = vmatprep.mubr.bf16.mxu0 %v1575
        %1675 = vmatmul.mubr.bf16.gmra.mxu0 %v1574
        %v1676 = vpop.f32.mrf.mxu0
        %v1677 = vadd.f32 0.0, %v1676
        %v1678 = vpop.f32.mrf.mxu0
        %v1679 = vpop.f32.mrf.mxu0
        %v1680 = vadd.f32 0.0, %v1679
        %v1681 = vpop.f32.mrf.mxu0
        %1682 = vmatprep.mubr.bf16.mxu0 %v1577
        %1683 = vmatmul.mubr.bf16.gmra.mxu0 %v1576
        %v1684 = vpop.f32.mrf.mxu0
        %v1685 = vadd.f32 0.0, %v1684
        %v1686 = vpop.f32.mrf.mxu0
        %v1687 = vpop.f32.mrf.mxu0
        %v1688 = vadd.f32 0.0, %v1687
        %v1689 = vpop.f32.mrf.mxu0
        %1690 = vmatprep.mubr.bf16.mxu0 %v1579
        %1691 = vmatmul.mubr.bf16.gmra.mxu0 %v1578
        %v1692 = vpop.f32.mrf.mxu0
        %v1693 = vadd.f32 0.0, %v1692
        %v1694 = vpop.f32.mrf.mxu0
        %v1695 = vpop.f32.mrf.mxu0
        %v1696 = vadd.f32 0.0, %v1695
        %v1697 = vpop.f32.mrf.mxu0
        %1698 = vmatprep.mubr.bf16.mxu0 %v1581
        %1699 = vmatmul.mubr.bf16.gmra.mxu0 %v1580
        %v1700 = vpop.f32.mrf.mxu0
        %v1701 = vadd.f32 0.0, %v1700
        %v1702 = vpop.f32.mrf.mxu0
        %v1703 = vpop.f32.mrf.mxu0
        %v1704 = vadd.f32 0.0, %v1703
        %v1705 = vpop.f32.mrf.mxu0
        %1706 = vmatprep.mubr.bf16.mxu0 %v1583
        %1707 = vmatmul.mubr.bf16.gmra.mxu0 %v1582
        %v1708 = vpop.f32.mrf.mxu0
        %v1709 = vadd.f32 0.0, %v1708
        %v1710 = vpop.f32.mrf.mxu0
        %v1711 = vpop.f32.mrf.mxu0
        %v1712 = vadd.f32 0.0, %v1711
        %v1713 = vpop.f32.mrf.mxu0
        %1714 = vmatprep.mubr.bf16.mxu0 %v1585
        %1715 = vmatmul.mubr.bf16.gmra.mxu0 %v1584
        %v1716 = vpop.f32.mrf.mxu0
        %v1717 = vadd.f32 0.0, %v1716
        %v1718 = vpop.f32.mrf.mxu0
        %v1719 = vpop.f32.mrf.mxu0
        %v1720 = vadd.f32 0.0, %v1719
        %v1721 = vpop.f32.mrf.mxu0
        %1722 = vmatprep.mubr.bf16.mxu0 %v1587
        %1723 = vmatmul.mubr.bf16.gmra.mxu0 %v1586
        %v1724 = vpop.f32.mrf.mxu0
        %v1725 = vadd.f32 0.0, %v1724
        %v1726 = vpop.f32.mrf.mxu0
        %v1727 = vpop.f32.mrf.mxu0
        %v1728 = vadd.f32 0.0, %v1727
        %v1729 = vpop.f32.mrf.mxu0
        %1730 = vmatprep.mubr.bf16.mxu0 %v1589
        %1731 = vmatmul.mubr.bf16.gmra.mxu0 %v1588
        %v1732 = vpop.f32.mrf.mxu0
        %v1733 = vadd.f32 0.0, %v1732
        %v1734 = vpop.f32.mrf.mxu0
        %v1735 = vpop.f32.mrf.mxu0
        %v1736 = vadd.f32 0.0, %v1735
        %v1737 = vpop.f32.mrf.mxu0
        %1738 = vmatprep.mubr.bf16.mxu0 %v1591
        %1739 = vmatmul.mubr.bf16.gmra.mxu0 %v1590
        %v1740 = vpop.f32.mrf.mxu0
        %v1741 = vadd.f32 0.0, %v1740
        %v1742 = vpop.f32.mrf.mxu0
        %v1743 = vpop.f32.mrf.mxu0
        %v1744 = vadd.f32 0.0, %v1743
        %v1745 = vpop.f32.mrf.mxu0
        %1746 = vmatprep.mubr.bf16.mxu0 %v1593
        %1747 = vmatmul.mubr.bf16.gmra.mxu0 %v1592
        %v1748 = vpop.f32.mrf.mxu0
        %v1749 = vadd.f32 0.0, %v1748
        %v1750 = vpop.f32.mrf.mxu0
        %v1751 = vpop.f32.mrf.mxu0
        %v1752 = vadd.f32 0.0, %v1751
        %v1753 = vpop.f32.mrf.mxu0
        %1754 = vdwg.mxu0
        %v1755 = vpack.c.bf16 %v1632, %v1629
        %v1756 = vpack.c.bf16 %v1640, %v1637
        %v1757 = vpack.c.bf16 %v1648, %v1645
        %v1758 = vpack.c.bf16 %v1656, %v1653
        %v1759 = vpack.c.bf16 %v1664, %v1661
        %v1760 = vpack.c.bf16 %v1672, %v1669
        %v1761 = vpack.c.bf16 %v1680, %v1677
        %v1762 = vpack.c.bf16 %v1688, %v1685
        %v1763 = vpack.c.bf16 %v1696, %v1693
        %v1764 = vpack.c.bf16 %v1704, %v1701
        %v1765 = vpack.c.bf16 %v1712, %v1709
        %v1766 = vpack.c.bf16 %v1720, %v1717
        %v1767 = vpack.c.bf16 %v1728, %v1725
        %v1768 = vpack.c.bf16 %v1736, %v1733
        %v1769 = vpack.c.bf16 %v1744, %v1741
        %v1770 = vpack.c.bf16 %v1752, %v1749
        %v1787 = vunpack.c.l.b16 %v1755
        %v1788 = vunpack.c.h.b16 %v1755
        %v1789 = vunpack.c.l.b16 %v1756
        %v1790 = vunpack.c.h.b16 %v1756
        %v1791 = vunpack.c.l.b16 %v1757
        %v1792 = vunpack.c.h.b16 %v1757
        %v1793 = vunpack.c.l.b16 %v1758
        %v1794 = vunpack.c.h.b16 %v1758
        %v1795 = vunpack.c.l.b16 %v1759
        %v1796 = vunpack.c.h.b16 %v1759
        %v1797 = vunpack.c.l.b16 %v1760
        %v1798 = vunpack.c.h.b16 %v1760
        %v1799 = vunpack.c.l.b16 %v1761
        %v1800 = vunpack.c.h.b16 %v1761
        %v1801 = vunpack.c.l.b16 %v1762
        %v1802 = vunpack.c.h.b16 %v1762
        %v1803 = vunpack.c.l.b16 %v1763
        %v1804 = vunpack.c.h.b16 %v1763
        %v1805 = vunpack.c.l.b16 %v1764
        %v1806 = vunpack.c.h.b16 %v1764
        %v1807 = vunpack.c.l.b16 %v1765
        %v1808 = vunpack.c.h.b16 %v1765
        %v1809 = vunpack.c.l.b16 %v1766
        %v1810 = vunpack.c.h.b16 %v1766
        %v1811 = vunpack.c.l.b16 %v1767
        %v1812 = vunpack.c.h.b16 %v1767
        %v1813 = vunpack.c.l.b16 %v1768
        %v1814 = vunpack.c.h.b16 %v1768
        %v1815 = vunpack.c.l.b16 %v1769
        %v1816 = vunpack.c.h.b16 %v1769
        %v1817 = vunpack.c.l.b16 %v1770
        %v1818 = vunpack.c.h.b16 %v1770
        %v1819 = vpack.c.b16 %v1787, %v1787
        %v1820 = vpack.c.b16 %v1788, %v1788
        %v1821 = vpack.c.b16 %v1789, %v1789
        %v1822 = vpack.c.b16 %v1790, %v1790
        %v1823 = vpack.c.b16 %v1791, %v1791
        %v1824 = vpack.c.b16 %v1792, %v1792
        %v1825 = vpack.c.b16 %v1793, %v1793
        %v1826 = vpack.c.b16 %v1794, %v1794
        %v1827 = vpack.c.b16 %v1795, %v1795
        %v1828 = vpack.c.b16 %v1796, %v1796
        %v1829 = vpack.c.b16 %v1797, %v1797
        %v1830 = vpack.c.b16 %v1798, %v1798
        %v1831 = vpack.c.b16 %v1799, %v1799
        %v1832 = vpack.c.b16 %v1800, %v1800
        %v1833 = vpack.c.b16 %v1801, %v1801
        %v1834 = vpack.c.b16 %v1802, %v1802
        %v1835 = vpack.c.b16 %v1803, %v1803
        %v1836 = vpack.c.b16 %v1804, %v1804
        %v1837 = vpack.c.b16 %v1805, %v1805
        %v1838 = vpack.c.b16 %v1806, %v1806
        %v1839 = vpack.c.b16 %v1807, %v1807
        %v1840 = vpack.c.b16 %v1808, %v1808
        %v1841 = vpack.c.b16 %v1809, %v1809
        %v1842 = vpack.c.b16 %v1810, %v1810
        %v1843 = vpack.c.b16 %v1811, %v1811
        %v1844 = vpack.c.b16 %v1812, %v1812
        %v1845 = vpack.c.b16 %v1813, %v1813
        %v1846 = vpack.c.b16 %v1814, %v1814
        %v1847 = vpack.c.b16 %v1815, %v1815
        %v1848 = vpack.c.b16 %v1816, %v1816
        %v1849 = vpack.c.b16 %v1817, %v1817
        %v1850 = vpack.c.b16 %v1818, %v1818
        %1883 = vst [vmem:[%s218] sm:$0xf] %v1819
        %1884 = vst [vmem:[%s218 + $0x4] sm:$0xf] %v1820
        %1885 = vst [vmem:[%s218 + $0x8] sm:$0xf] %v1821
        %1886 = vst [vmem:[%s218 + $0xc] sm:$0xf] %v1822
        %1887 = vst [vmem:[%s218 + $0x10] sm:$0xf] %v1823
        %1888 = vst [vmem:[%s218 + $0x14] sm:$0xf] %v1824
        %1889 = vst [vmem:[%s218 + $0x18] sm:$0xf] %v1825
        %1890 = vst [vmem:[%s218 + $0x1c] sm:$0xf] %v1826
        %1891 = vst [vmem:[%s218 + $0x20] sm:$0xf] %v1827
        %1892 = vst [vmem:[%s218 + $0x24] sm:$0xf] %v1828
        %1893 = vst [vmem:[%s218 + $0x28] sm:$0xf] %v1829
        %1894 = vst [vmem:[%s218 + $0x2c] sm:$0xf] %v1830
        %1895 = vst [vmem:[%s218 + $0x30] sm:$0xf] %v1831
        %1896 = vst [vmem:[%s218 + $0x34] sm:$0xf] %v1832
        %1897 = vst [vmem:[%s218 + $0x38] sm:$0xf] %v1833
        %1898 = vst [vmem:[%s218 + $0x3c] sm:$0xf] %v1834
        %1899 = vst [vmem:[%s218 + $0x40] sm:$0xf] %v1835
        %1900 = vst [vmem:[%s218 + $0x44] sm:$0xf] %v1836
        %1901 = vst [vmem:[%s218 + $0x48] sm:$0xf] %v1837
        %1902 = vst [vmem:[%s218 + $0x4c] sm:$0xf] %v1838
        %1903 = vst [vmem:[%s218 + $0x50] sm:$0xf] %v1839
        %1904 = vst [vmem:[%s218 + $0x54] sm:$0xf] %v1840
        %1905 = vst [vmem:[%s218 + $0x58] sm:$0xf] %v1841
        %1906 = vst [vmem:[%s218 + $0x5c] sm:$0xf] %v1842
        %1907 = vst [vmem:[%s218 + $0x60] sm:$0xf] %v1843
        %1908 = vst [vmem:[%s218 + $0x64] sm:$0xf] %v1844
        %1909 = vst [vmem:[%s218 + $0x68] sm:$0xf] %v1845
        %1910 = vst [vmem:[%s218 + $0x6c] sm:$0xf] %v1846
        %1911 = vst [vmem:[%s218 + $0x70] sm:$0xf] %v1847
        %1912 = vst [vmem:[%s218 + $0x74] sm:$0xf] %v1848
        %1913 = vst [vmem:[%s218 + $0x78] sm:$0xf] %v1849
        %1914 = vst [vmem:[%s218 + $0x7c] sm:$0xf] %v1850
        %s1915 = sand.u32 %s97, 1
        %s1916 = scalar_lea.sflag [#allocation4], %s1915
        %s1917 = sand.u32 %s97, 1
        %s1918 = smul.addr %s1917, 128
        %s1919 = scalar_lea.vmem [#allocation8], %s1918
        // Predicated region
        $region45: #{tpu_custom_call.1} parent=31 // pred_check
          %p1920 = pneg %p107
        $region46: #{tpu_custom_call.1} parent=31 // pred_check_branch
          %1922 = sbr.rel (%p1920) target = $region48
        $region47: #{tpu_custom_call.1} parent=31 // pred_region
          %s1923 = smul.u32 16, %s21
          %s1925 = ssub.s32 2048, 2048
          %1926 = vsyncadd %s1916, %s1925
          %s1927 = smul.addr %s1923, 2
          %s1928 = smul.addr %s1927, 64
          %s1929 = scalar_lea.hbm %s3, %s1928
          %s1930 = sshll.u32 %s1919, 4
          %s1931 = int_to_ptr.vmem [resolvable:$true] %s1930
          %1936 = dma.vmem_to_hbm [thread:$0]  %s1931, 2048, %s1929, %s1916, 64, 64, 4
        $region48: #{tpu_custom_call.1} parent=31 // pred_fallthru
          _
      $region32: #{tpu_custom_call.1} parent=5 // pred_fallthru
        _
      %p1937 = scmp.le.s32.totalorder 2, %s16
      // Predicated region
      $region49: #{tpu_custom_call.1} parent=5 // pred_check
        %p1938 = pneg %p1937
      $region50: #{tpu_custom_call.1} parent=5 // pred_check_branch
        %1940 = sbr.rel (%p1938) target = $region52
      $region51: #{tpu_custom_call.1} parent=5 // pred_region
        %s1941 = ssub.s32 %s16, 2
        // Predicated region
        $region53: #{tpu_custom_call.1} parent=51 // pred_check
          %p1942 = pneg %p113
        $region54: #{tpu_custom_call.1} parent=51 // pred_check_branch
          %1944 = sbr.rel (%p1942) target = $region56
        $region55: #{tpu_custom_call.1} parent=51 // pred_region
          %s1945 = sand.u32 %s98, 1
          %s1946 = scalar_lea.sflag [#allocation4], %s1945
          %s1947 = sand.u32 %s98, 1
          %s1948 = smul.addr %s1947, 128
          %s1949 = scalar_lea.vmem [#allocation8], %s1948
          %1950 = dma.done %s1946, 2048
        $region56: #{tpu_custom_call.1} parent=51 // pred_fallthru
          _
      $region52: #{tpu_custom_call.1} parent=5 // pred_fallthru
        _
    $region6: #{tpu_custom_call.1} parent=1 // loop_footer
      %s20 = sadd.s32 1, %s16
    $region7: #{tpu_custom_call.1} parent=1 // loop_footer_branch
      %15 = sbr.rel target = $region3
    $region8: #{tpu_custom_call.1} parent=1 // loop_exit
      _
    %1951 = vsyncpa [#allocation3], 1
    %s1952 = scalar_lea.sflag [#allocation3], 1
    %1953 = vsyncpa %s1952, 1
    %1954 = vsyncpa [#allocation6], 1
    %1955 = vsyncpa [#allocation4], 1
    %s1956 = scalar_lea.sflag [#allocation4], 1
    %1957 = vsyncpa %s1956, 1

</llo_original>
